<compile_context>
chip_gen: v7x
topology: tpu7x:2x2x1
jax: 0.10.0
libtpu: 0.0.40
codegen_flags: <defaults>
</compile_context>

<pallas_src>
import math
import functools
import numpy as np

import jax
import jax.numpy as jnp
from jax import lax
from jax.experimental import pallas as pl
from jax.experimental.pallas import tpu as pltpu  # noqa: F401

EPS = 1e-5  # torch.nn.LayerNorm default eps


def _layernorm(x, gamma, beta):
    mu = jnp.mean(x, axis=-1, keepdims=True)
    var = jnp.mean((x - mu) ** 2, axis=-1, keepdims=True)
    return (x - mu) * jax.lax.rsqrt(var + EPS) * gamma + beta


# --------------------------- parameter slab layout ----------------------------

def make_layout(config, batch):
    """Static row layout of the single parameter slab: name -> (row, nrows, ncols).
    Every block is padded to a multiple of 8 rows so all ref slices stay
    sublane-tile aligned; the slab is 128 lanes wide (lane-dense for every block)."""
    H = config['num_heads']; E = config['embed_dim']; dk = E // H
    F = config['feature_dim']; FF = config['ff_dim']; S = config['sequence_length']
    L = config['num_layers']
    n_heads_cls = 2 * len(config['prediction_horizons'])
    hidden = E // 2
    CH = 4 * dk                       # per-head padded [q|k|v|pad] lane chunk
    NH = H * batch * S

    entries = [('we', F, E), ('be', 1, E), ('gin', 1, E), ('bin', 1, E),
               ('pe', batch * S, E), ('mask', NH, NH)]
    for l in range(L):
        p = f'l{l}_'
        entries += [(p + 'wqkv', E, H * CH), (p + 'bqkv', 1, H * CH),
                    (p + 'wo', E, E), (p + 'bo', 1, E),
                    (p + 'g1', 1, E), (p + 'be1', 1, E),
                    (p + 'wff1', E, FF), (p + 'bff1', 1, FF),
                    (p + 'wff2', FF, E), (p + 'bff2', 1, E),
                    (p + 'g2', 1, E), (p + 'be2', 1, E)]
    entries += [('wh1', E, n_heads_cls * hidden), ('bh1', 1, n_heads_cls * hidden),
                ('wh2', n_heads_cls * hidden, 2 * n_heads_cls),
                ('bh2', 1, 2 * n_heads_cls)]

    lanes = 128 * max(1, math.ceil(max(c for _, _, c in entries) / 128))
    layout, r = {}, 0
    for name, nr, nc in entries:
        layout[name] = (r, nr, nc)
        r += ((nr + 7) // 8) * 8      # 8-row aligned blocks
    return layout, r, lanes


def pack_params(params, config, batch):
    """One-time host-side packing of all parameters into one lane-dense slab
    (layout plumbing done once, outside the jitted per-call path)."""
    H = config['num_heads']; E = config['embed_dim']; dk = E // H
    S = config['sequence_length']
    layout, total_rows, lanes = make_layout(config, batch)
    slab = np.zeros((total_rows, lanes), np.float32)

    def put(name, arr):
        a = np.asarray(arr, np.float32)
        r0, nr, nc = layout[name]
        assert a.shape == (nr, nc), (name, a.shape, (nr, nc))
        slab[r0:r0 + nr, 0:nc] = a

    ep = params['embed']
    put('we', ep['we']); put('be', ep['be']); put('gin', ep['g']); put('bin', ep['b'])
    put('pe', np.tile(np.asarray(params['pe']), (batch, 1)))          # [B*S, E]

    # additive block-diagonal mask over (head, batch) groups of the head-folded
    # score matrix: 0 in-group, -1e30 elsewhere (exp underflows to exactly 0)
    NH = H * batch * S
    grp = np.arange(NH) // S
    put('mask', np.where(grp[:, None] == grp[None, :], 0.0, -1e30).astype(np.float32))

    CH = 4 * dk
    scale = 1.0 / math.sqrt(dk)       # folded into the Q projection
    for l, lp in enumerate(params['blocks']):
        wq = np.asarray(lp['wq']) * scale; bq = np.asarray(lp['bq']) * scale
        wk, bk = np.asarray(lp['wk']), np.asarray(lp['bk'])
        wv, bv = np.asarray(lp['wv']), np.asarray(lp['bv'])
        wqkv = np.zeros((E, H * CH), np.float32)
        bqkv = np.zeros((1, H * CH), np.float32)
        for hh in range(H):
            sl = slice(hh * dk, (hh + 1) * dk)
            c = hh * CH
            wqkv[:, c:c + dk] = wq[:, sl];               bqkv[:, c:c + dk] = bq[:, sl]
            wqkv[:, c + dk:c + 2 * dk] = wk[:, sl];      bqkv[:, c + dk:c + 2 * dk] = bk[:, sl]
            wqkv[:, c + 2 * dk:c + 3 * dk] = wv[:, sl];  bqkv[:, c + 2 * dk:c + 3 * dk] = bv[:, sl]
        pre = f'l{l}_'
        put(pre + 'wqkv', wqkv); put(pre + 'bqkv', bqkv)
        put(pre + 'wo', lp['wo']); put(pre + 'bo', lp['bo'])
        put(pre + 'g1', lp['g1']); put(pre + 'be1', lp['be1'])
        put(pre + 'wff1', lp['w1']); put(pre + 'bff1', lp['b1'])
        put(pre + 'wff2', lp['w2']); put(pre + 'bff2', lp['b2'])
        put(pre + 'g2', lp['g2']); put(pre + 'be2', lp['be2'])

    # fused classifier heads: stability horizons then direction horizons
    head_list = ([params['stability'][f'{hz}min'] for hz in config['prediction_horizons']]
                 + [params['direction'][f'{hz}min'] for hz in config['prediction_horizons']])
    hidden = E // 2
    nh = len(head_list)
    put('wh1', np.concatenate([np.asarray(hp['w1']) for hp in head_list], axis=1))
    put('bh1', np.concatenate([np.asarray(hp['b1']) for hp in head_list], axis=1))
    wh2 = np.zeros((nh * hidden, nh * 2), np.float32)
    for i, hp in enumerate(head_list):
        wh2[i * hidden:(i + 1) * hidden, i * 2:(i + 1) * 2] = np.asarray(hp['w2'])
    put('wh2', wh2)
    put('bh2', np.concatenate([np.asarray(hp['b2']) for hp in head_list], axis=1))

    return jnp.asarray(slab), layout


# -------------------------------- fused kernel --------------------------------

def fused_forward_kernel(x_ref, p_ref, o_ref, *, layout, num_layers, num_heads,
                         d_k, batch, seq):
    E = num_heads * d_k
    N = batch * seq                 # rows with batch folded into sublanes
    CH = 4 * d_k                    # padded per-head [q|k|v|pad] lane chunk

    def W(name):                    # static-offset slice of the parameter slab
        r0, nr, nc = layout[name]
        return p_ref[r0:r0 + nr, 0:nc]

    # embedding -> LayerNorm -> + positional encoding
    h = jnp.dot(x_ref[...], W('we'), preferred_element_type=jnp.float32) + W('be')
    h = _layernorm(h, W('gin'), W('bin'))
    h = h + W('pe')                                               # [N, E]

    attn_mask = W('mask')                                         # [H*N, H*N], additive

    for l in range(num_layers):     # static unrolled layer loop; weights stay in VMEM
        pre = f'l{l}_'
        # fused QKV projection; per-head lane chunk is [q|k|v|pad], 32-lane aligned
        qkv = jnp.dot(h, W(pre + 'wqkv'), preferred_element_type=jnp.float32) + W(pre + 'bqkv')
        # fold heads into sublanes with aligned slices: [N, H*CH] -> [H*N, CH]
        qkv_hb = jnp.concatenate(
            [qkv[:, hh * CH:(hh + 1) * CH] for hh in range(num_heads)], axis=0)
        q = qkv_hb[:, 0:d_k]               # already pre-scaled by 1/sqrt(d_k)
        k = qkv_hb[:, d_k:2 * d_k]
        v = qkv_hb[:, 2 * d_k:3 * d_k]

        # scores for all heads x batches at once; contract last dims (no explicit k.T)
        s = lax.dot_general(q, k, dimension_numbers=(((1,), (1,)), ((), ())),
                            preferred_element_type=jnp.float32) + attn_mask
        s = s - jnp.max(s, axis=-1, keepdims=True)
        pr = jnp.exp(s)                                            # masked -> exactly 0
        pr = pr * (1.0 / jnp.sum(pr, axis=-1, keepdims=True))      # row recip + bcast mul
        ctx = jnp.dot(pr, v, preferred_element_type=jnp.float32)   # [H*N, d_k]

        # un-fold heads back to lanes, then the plain output projection
        ctx_m = jnp.concatenate(
            [ctx[hh * N:(hh + 1) * N, :] for hh in range(num_heads)], axis=1)   # [N, E]
        attn = jnp.dot(ctx_m, W(pre + 'wo'), preferred_element_type=jnp.float32) + W(pre + 'bo')

        # residual + LN, feed-forward, residual + LN
        h = _layernorm(h + attn, W(pre + 'g1'), W(pre + 'be1'))
        ff = jnp.maximum(
            jnp.dot(h, W(pre + 'wff1'), preferred_element_type=jnp.float32) + W(pre + 'bff1'),
            0.0)
        ff = jnp.dot(ff, W(pre + 'wff2'), preferred_element_type=jnp.float32) + W(pre + 'bff2')
        h = _layernorm(h + ff, W(pre + 'g2'), W(pre + 'be2'))

    # last-token pooling: static row slices (no selection-matrix matmul)
    pooled = jnp.concatenate(
        [h[b * seq + seq - 1: b * seq + seq, :] for b in range(batch)], axis=0)  # [B, E]

    # fused classifier heads: shared first layer + ReLU, block-diagonal second layer
    hid = jnp.maximum(
        jnp.dot(pooled, W('wh1'), preferred_element_type=jnp.float32) + W('bh1'), 0.0)
    o_ref[...] = jnp.dot(hid, W('wh2'), preferred_element_type=jnp.float32) + W('bh2')


# ---------------------------------- forward -----------------------------------

def make_forward(config, batch, layout):
    E = config['embed_dim']; H = config['num_heads']; L = config['num_layers']
    S = config['sequence_length']; F = config['feature_dim']
    horizons = config['prediction_horizons']
    n_heads_cls = 2 * len(horizons)

    kern = functools.partial(fused_forward_kernel, layout=layout, num_layers=L,
                             num_heads=H, d_k=E // H, batch=batch, seq=S)

    @jax.jit
    def forward(x, pslab):
        x2 = x.reshape(batch * S, F)           # fold batch into sublanes
        # Single fused, gridless invocation: 2 input DMAs (x + parameter slab),
        # whole forward computed with all weights resident in VMEM.
        logits = pl.pallas_call(
            kern,
            out_shape=jax.ShapeDtypeStruct((batch, 2 * n_heads_cls), jnp.float32),
        )(x2, pslab)
        preds, i = {}, 0
        for hz in horizons:
            preds[f'stability_{hz}min'] = logits[:, 2 * i:2 * i + 2]; i += 1
        for hz in horizons:
            preds[f'direction_{hz}min'] = logits[:, 2 * i:2 * i + 2]; i += 1
        return preds

    return forward


# ----------------------- deterministic parameter init -------------------------

def init_params(key, cfg):
    F, E, FF = cfg['feature_dim'], cfg['embed_dim'], cfg['ff_dim']
    S = cfg['sequence_length']
    keys = iter(jax.random.split(key, 256))

    def lin(in_d, out_d):                       # xavier_uniform_ weight, zero bias
        bound = math.sqrt(6.0 / (in_d + out_d))
        w = jax.random.uniform(next(keys), (out_d, in_d), jnp.float32, -bound, bound)
        return w.T, jnp.zeros((1, out_d), jnp.float32)   # stored as [in, out]

    def ln(d):
        return jnp.ones((1, d), jnp.float32), jnp.zeros((1, d), jnp.float32)

    we, be = lin(F, E)
    g, b = ln(E)

    # sinusoidal positional encoding table (PositionalEncoding buffer)
    pe = np.zeros((S, E), dtype=np.float32)
    position = np.arange(S, dtype=np.float32)[:, None]
    div_term = np.exp(np.arange(0, E, 2, dtype=np.float32) * (-math.log(10000.0) / E))
    pe[:, 0::2] = np.sin(position * div_term)
    pe[:, 1::2] = np.cos(position * div_term)

    blocks = []
    for _ in range(cfg['num_layers']):
        wq, bq = lin(E, E); wk, bk = lin(E, E); wv, bv = lin(E, E); wo, bo = lin(E, E)
        g1, be1 = ln(E); g2, be2 = ln(E)
        w1, b1 = lin(E, FF); w2, b2 = lin(FF, E)
        blocks.append(dict(wq=wq, bq=bq, wk=wk, bk=bk, wv=wv, bv=bv, wo=wo, bo=bo,
                           g1=g1, be1=be1, w1=w1, b1=b1, w2=w2, b2=b2, g2=g2, be2=be2))

    def head():
        w1, b1 = lin(E, E // 2); w2, b2 = lin(E // 2, 2)
        return dict(w1=w1, b1=b1, w2=w2, b2=b2)

    stability = {f'{h}min': head() for h in cfg['prediction_horizons']}
    direction = {f'{h}min': head() for h in cfg['prediction_horizons']}
    return dict(embed=dict(we=we, be=be, g=g, b=b), pe=jnp.asarray(pe),
                blocks=blocks, stability=stability, direction=direction)


# --------------------------- pure-JAX reference --------------------------------

def ref_forward(x, params, config):
    ep = params['embed']
    h = _layernorm(x @ ep['we'] + ep['be'], ep['g'], ep['b']) + params['pe'][None]
    H = config['num_heads']
    for lp in params['blocks']:
        B, S, E = h.shape
        dk = E // H
        q = (h @ lp['wq'] + lp['bq']).reshape(B, S, H, dk).transpose(0, 2, 1, 3)
        k = (h @ lp['wk'] + lp['bk']).reshape(B, S, H, dk).transpose(0, 2, 1, 3)
        v = (h @ lp['wv'] + lp['bv']).reshape(B, S, H, dk).transpose(0, 2, 1, 3)
        s = q @ k.transpose(0, 1, 3, 2) / math.sqrt(dk)
        attn = (jax.nn.softmax(s, axis=-1) @ v).transpose(0, 2, 1, 3).reshape(B, S, E)
        attn = attn @ lp['wo'] + lp['bo']
        h1 = _layernorm(h + attn, lp['g1'], lp['be1'])
        ff = jnp.maximum(h1 @ lp['w1'] + lp['b1'], 0.0) @ lp['w2'] + lp['b2']
        h = _layernorm(h1 + ff, lp['g2'], lp['be2'])
    pooled = h[:, -1, :]
    out = {}
    for task, tp in (('stability', params['stability']), ('direction', params['direction'])):
        for hz in config['prediction_horizons']:
            hp = tp[f'{hz}min']
            out[f'{task}_{hz}min'] = (jnp.maximum(pooled @ hp['w1'] + hp['b1'], 0.0)
                                      @ hp['w2'] + hp['b2'])
    return out


# ------------------------------------ main -------------------------------------

if __name__ == "__main__":
    config = dict(feature_dim=8, embed_dim=32, num_heads=4, num_layers=2,
                  ff_dim=64, dropout=0.1, sequence_length=8,
                  prediction_horizons=[5, 15])
    B = 2

    key = jax.random.PRNGKey(0)
    kx, kp = jax.random.split(key)
    x = jax.random.normal(kx, (B, config['sequence_length'], config['feature_dim']),
                          dtype=jnp.float32)
    params = init_params(kp, config)

    # one-time packing (hoisted out of the per-call path), jitted forward
    pslab, layout = pack_params(params, config, B)
    forward = make_forward(config, B, layout)

    preds = forward(x, pslab)
    preds = jax.tree_util.tree_map(jax.block_until_ready, preds)

    # silent correctness check against a pure-JAX reference
    ref = ref_forward(x, params, config)
    for name in ref:
        assert preds[name].shape == (B, 2)
        assert jnp.allclose(preds[name], ref[name], atol=1e-4, rtol=1e-4), name

    print("KERNEL_OK")
</pallas_src>

<mosaic_0001>
module attributes {stable_mosaic.version = 11 : i64} {
  func.func @fused_forward_kernel(%arg0: memref<16x8xf32, #tpu.memory_space<vmem>>, %arg1: memref<672x128xf32, #tpu.memory_space<vmem>>, %arg2: memref<2x8xf32, #tpu.memory_space<vmem>>) attributes {dimension_semantics = [], scalar_prefetch = 0 : i64, scratch_operands = 0 : i64, tpu.core_type = #tpu.core_type<tc>} {
    %c0 = arith.constant 0 : index
    %c0_0 = arith.constant 0 : index
    %0 = vector.load %arg0[%c0, %c0_0] : memref<16x8xf32, #tpu.memory_space<vmem>>, vector<16x8xf32>
    %c0_1 = arith.constant 0 : index
    %c0_2 = arith.constant 0 : index
    %1 = vector.load %arg1[%c0_1, %c0_2] : memref<672x128xf32, #tpu.memory_space<vmem>>, vector<8x32xf32>
    %cst = arith.constant dense<0.000000e+00> : vector<16x32xf32>
    %2 = tpu.matmul %0, %1, %cst {dimension_numbers = #tpu.dot_dimension_numbers<[1], [0], [0], [1], [0, 0, 1, 1], [], []>} : vector<16x8xf32>, vector<8x32xf32>, vector<16x32xf32> -> vector<16x32xf32>
    %c8 = arith.constant 8 : index
    %c0_3 = arith.constant 0 : index
    %3 = vector.load %arg1[%c8, %c0_3] : memref<672x128xf32, #tpu.memory_space<vmem>>, vector<1x32xf32>
    %4 = vector.broadcast %3 : vector<1x32xf32> to vector<16x32xf32>
    %5 = arith.addf %2, %4 : vector<16x32xf32>
    %c16 = arith.constant 16 : index
    %c0_4 = arith.constant 0 : index
    %6 = vector.load %arg1[%c16, %c0_4] : memref<672x128xf32, #tpu.memory_space<vmem>>, vector<1x32xf32>
    %c24 = arith.constant 24 : index
    %c0_5 = arith.constant 0 : index
    %7 = vector.load %arg1[%c24, %c0_5] : memref<672x128xf32, #tpu.memory_space<vmem>>, vector<1x32xf32>
    %cst_6 = arith.constant dense<0.000000e+00> : vector<16xf32>
    %8 = vector.multi_reduction <add>, %5, %cst_6 [1] : vector<16x32xf32> to vector<16xf32>
    %9 = vector.shape_cast %8 : vector<16xf32> to vector<16x1xf32>
    %cst_7 = arith.constant 3.200000e+01 : f32
    %10 = vector.broadcast %cst_7 : f32 to vector<16x1xf32>
    %11 = arith.divf %9, %10 : vector<16x1xf32>
    %12 = vector.broadcast %11 : vector<16x1xf32> to vector<16x32xf32>
    %13 = arith.subf %5, %12 : vector<16x32xf32>
    %14 = arith.mulf %13, %13 : vector<16x32xf32>
    %cst_8 = arith.constant dense<0.000000e+00> : vector<16xf32>
    %15 = vector.multi_reduction <add>, %14, %cst_8 [1] : vector<16x32xf32> to vector<16xf32>
    %16 = vector.shape_cast %15 : vector<16xf32> to vector<16x1xf32>
    %cst_9 = arith.constant 3.200000e+01 : f32
    %17 = vector.broadcast %cst_9 : f32 to vector<16x1xf32>
    %18 = arith.divf %16, %17 : vector<16x1xf32>
    %19 = vector.broadcast %11 : vector<16x1xf32> to vector<16x32xf32>
    %20 = arith.subf %5, %19 : vector<16x32xf32>
    %cst_10 = arith.constant 9.99999974E-6 : f32
    %21 = vector.broadcast %cst_10 : f32 to vector<16x1xf32>
    %22 = arith.addf %18, %21 : vector<16x1xf32>
    %23 = math.rsqrt %22 : vector<16x1xf32>
    %24 = vector.broadcast %23 : vector<16x1xf32> to vector<16x32xf32>
    %25 = arith.mulf %20, %24 : vector<16x32xf32>
    %26 = vector.broadcast %6 : vector<1x32xf32> to vector<16x32xf32>
    %27 = arith.mulf %25, %26 : vector<16x32xf32>
    %28 = vector.broadcast %7 : vector<1x32xf32> to vector<16x32xf32>
    %29 = arith.addf %27, %28 : vector<16x32xf32>
    %c32 = arith.constant 32 : index
    %c0_11 = arith.constant 0 : index
    %30 = vector.load %arg1[%c32, %c0_11] : memref<672x128xf32, #tpu.memory_space<vmem>>, vector<16x32xf32>
    %31 = arith.addf %29, %30 : vector<16x32xf32>
    %c48 = arith.constant 48 : index
    %c0_12 = arith.constant 0 : index
    %32 = vector.load %arg1[%c48, %c0_12] : memref<672x128xf32, #tpu.memory_space<vmem>>, vector<64x64xf32>
    %c112 = arith.constant 112 : index
    %c0_13 = arith.constant 0 : index
    %33 = vector.load %arg1[%c112, %c0_13] : memref<672x128xf32, #tpu.memory_space<vmem>>, vector<32x128xf32>
    %cst_14 = arith.constant dense<0.000000e+00> : vector<16x128xf32>
    %34 = tpu.matmul %31, %33, %cst_14 {dimension_numbers = #tpu.dot_dimension_numbers<[1], [0], [0], [1], [0, 0, 1, 1], [], []>} : vector<16x32xf32>, vector<32x128xf32>, vector<16x128xf32> -> vector<16x128xf32>
    %c144 = arith.constant 144 : index
    %c0_15 = arith.constant 0 : index
    %35 = vector.load %arg1[%c144, %c0_15] : memref<672x128xf32, #tpu.memory_space<vmem>>, vector<1x128xf32>
    %36 = vector.broadcast %35 : vector<1x128xf32> to vector<16x128xf32>
    %37 = arith.addf %34, %36 : vector<16x128xf32>
    %38 = vector.extract_strided_slice %37 {offsets = [0, 0], sizes = [16, 32], strides = [1, 1]} : vector<16x128xf32> to vector<16x32xf32>
    %39 = vector.extract_strided_slice %37 {offsets = [0, 32], sizes = [16, 32], strides = [1, 1]} : vector<16x128xf32> to vector<16x32xf32>
    %40 = vector.extract_strided_slice %37 {offsets = [0, 64], sizes = [16, 32], strides = [1, 1]} : vector<16x128xf32> to vector<16x32xf32>
    %41 = vector.extract_strided_slice %37 {offsets = [0, 96], sizes = [16, 32], strides = [1, 1]} : vector<16x128xf32> to vector<16x32xf32>
    %42 = tpu.concatenate %38, %39, %40, %41 in 0 : vector<16x32xf32>, vector<16x32xf32>, vector<16x32xf32>, vector<16x32xf32> -> vector<64x32xf32>
    %43 = vector.extract_strided_slice %42 {offsets = [0, 0], sizes = [64, 8], strides = [1, 1]} : vector<64x32xf32> to vector<64x8xf32>
    %44 = vector.extract_strided_slice %42 {offsets = [0, 8], sizes = [64, 8], strides = [1, 1]} : vector<64x32xf32> to vector<64x8xf32>
    %45 = vector.extract_strided_slice %42 {offsets = [0, 16], sizes = [64, 8], strides = [1, 1]} : vector<64x32xf32> to vector<64x8xf32>
    %cst_16 = arith.constant dense<0.000000e+00> : vector<64x64xf32>
    %46 = tpu.matmul %43, %44, %cst_16 {dimension_numbers = #tpu.dot_dimension_numbers<[1], [1], [0], [0], [0, 0, 1, 0], [], []>} : vector<64x8xf32>, vector<64x8xf32>, vector<64x64xf32> -> vector<64x64xf32>
    %47 = arith.addf %46, %32 : vector<64x64xf32>
    %cst_17 = arith.constant dense<0xFF800000> : vector<64xf32>
    %48 = vector.multi_reduction <maximumf>, %47, %cst_17 [1] : vector<64x64xf32> to vector<64xf32>
    %49 = vector.shape_cast %48 : vector<64xf32> to vector<64x1xf32>
    %50 = vector.broadcast %49 : vector<64x1xf32> to vector<64x64xf32>
    %51 = arith.subf %47, %50 : vector<64x64xf32>
    %52 = math.exp %51 : vector<64x64xf32>
    %cst_18 = arith.constant dense<0.000000e+00> : vector<64xf32>
    %53 = vector.multi_reduction <add>, %52, %cst_18 [1] : vector<64x64xf32> to vector<64xf32>
    %54 = vector.shape_cast %53 : vector<64xf32> to vector<64x1xf32>
    %cst_19 = arith.constant 1.000000e+00 : f32
    %55 = vector.broadcast %cst_19 : f32 to vector<64x1xf32>
    %56 = arith.divf %55, %54 : vector<64x1xf32>
    %57 = vector.broadcast %56 : vector<64x1xf32> to vector<64x64xf32>
    %58 = arith.mulf %52, %57 : vector<64x64xf32>
    %cst_20 = arith.constant dense<0.000000e+00> : vector<64x8xf32>
    %59 = tpu.matmul %58, %45, %cst_20 {dimension_numbers = #tpu.dot_dimension_numbers<[1], [0], [0], [1], [0, 0, 1, 1], [], []>} : vector<64x64xf32>, vector<64x8xf32>, vector<64x8xf32> -> vector<64x8xf32>
    %60 = vector.extract_strided_slice %59 {offsets = [0, 0], sizes = [16, 8], strides = [1, 1]} : vector<64x8xf32> to vector<16x8xf32>
    %61 = vector.extract_strided_slice %59 {offsets = [16, 0], sizes = [16, 8], strides = [1, 1]} : vector<64x8xf32> to vector<16x8xf32>
    %62 = vector.extract_strided_slice %59 {offsets = [32, 0], sizes = [16, 8], strides = [1, 1]} : vector<64x8xf32> to vector<16x8xf32>
    %63 = vector.extract_strided_slice %59 {offsets = [48, 0], sizes = [16, 8], strides = [1, 1]} : vector<64x8xf32> to vector<16x8xf32>
    %64 = tpu.concatenate %60, %61, %62, %63 in 1 : vector<16x8xf32>, vector<16x8xf32>, vector<16x8xf32>, vector<16x8xf32> -> vector<16x32xf32>
    %c152 = arith.constant 152 : index
    %c0_21 = arith.constant 0 : index
    %65 = vector.load %arg1[%c152, %c0_21] : memref<672x128xf32, #tpu.memory_space<vmem>>, vector<32x32xf32>
    %cst_22 = arith.constant dense<0.000000e+00> : vector<16x32xf32>
    %66 = tpu.matmul %64, %65, %cst_22 {dimension_numbers = #tpu.dot_dimension_numbers<[1], [0], [0], [1], [0, 0, 1, 1], [], []>} : vector<16x32xf32>, vector<32x32xf32>, vector<16x32xf32> -> vector<16x32xf32>
    %c184 = arith.constant 184 : index
    %c0_23 = arith.constant 0 : index
    %67 = vector.load %arg1[%c184, %c0_23] : memref<672x128xf32, #tpu.memory_space<vmem>>, vector<1x32xf32>
    %68 = vector.broadcast %67 : vector<1x32xf32> to vector<16x32xf32>
    %69 = arith.addf %66, %68 : vector<16x32xf32>
    %70 = arith.addf %31, %69 : vector<16x32xf32>
    %c192 = arith.constant 192 : index
    %c0_24 = arith.constant 0 : index
    %71 = vector.load %arg1[%c192, %c0_24] : memref<672x128xf32, #tpu.memory_space<vmem>>, vector<1x32xf32>
    %c200 = arith.constant 200 : index
    %c0_25 = arith.constant 0 : index
    %72 = vector.load %arg1[%c200, %c0_25] : memref<672x128xf32, #tpu.memory_space<vmem>>, vector<1x32xf32>
    %cst_26 = arith.constant dense<0.000000e+00> : vector<16xf32>
    %73 = vector.multi_reduction <add>, %70, %cst_26 [1] : vector<16x32xf32> to vector<16xf32>
    %74 = vector.shape_cast %73 : vector<16xf32> to vector<16x1xf32>
    %cst_27 = arith.constant 3.200000e+01 : f32
    %75 = vector.broadcast %cst_27 : f32 to vector<16x1xf32>
    %76 = arith.divf %74, %75 : vector<16x1xf32>
    %77 = vector.broadcast %76 : vector<16x1xf32> to vector<16x32xf32>
    %78 = arith.subf %70, %77 : vector<16x32xf32>
    %79 = arith.mulf %78, %78 : vector<16x32xf32>
    %cst_28 = arith.constant dense<0.000000e+00> : vector<16xf32>
    %80 = vector.multi_reduction <add>, %79, %cst_28 [1] : vector<16x32xf32> to vector<16xf32>
    %81 = vector.shape_cast %80 : vector<16xf32> to vector<16x1xf32>
    %cst_29 = arith.constant 3.200000e+01 : f32
    %82 = vector.broadcast %cst_29 : f32 to vector<16x1xf32>
    %83 = arith.divf %81, %82 : vector<16x1xf32>
    %84 = vector.broadcast %76 : vector<16x1xf32> to vector<16x32xf32>
    %85 = arith.subf %70, %84 : vector<16x32xf32>
    %cst_30 = arith.constant 9.99999974E-6 : f32
    %86 = vector.broadcast %cst_30 : f32 to vector<16x1xf32>
    %87 = arith.addf %83, %86 : vector<16x1xf32>
    %88 = math.rsqrt %87 : vector<16x1xf32>
    %89 = vector.broadcast %88 : vector<16x1xf32> to vector<16x32xf32>
    %90 = arith.mulf %85, %89 : vector<16x32xf32>
    %91 = vector.broadcast %71 : vector<1x32xf32> to vector<16x32xf32>
    %92 = arith.mulf %90, %91 : vector<16x32xf32>
    %93 = vector.broadcast %72 : vector<1x32xf32> to vector<16x32xf32>
    %94 = arith.addf %92, %93 : vector<16x32xf32>
    %c208 = arith.constant 208 : index
    %c0_31 = arith.constant 0 : index
    %95 = vector.load %arg1[%c208, %c0_31] : memref<672x128xf32, #tpu.memory_space<vmem>>, vector<32x64xf32>
    %cst_32 = arith.constant dense<0.000000e+00> : vector<16x64xf32>
    %96 = tpu.matmul %94, %95, %cst_32 {dimension_numbers = #tpu.dot_dimension_numbers<[1], [0], [0], [1], [0, 0, 1, 1], [], []>} : vector<16x32xf32>, vector<32x64xf32>, vector<16x64xf32> -> vector<16x64xf32>
    %c240 = arith.constant 240 : index
    %c0_33 = arith.constant 0 : index
    %97 = vector.load %arg1[%c240, %c0_33] : memref<672x128xf32, #tpu.memory_space<vmem>>, vector<1x64xf32>
    %98 = vector.broadcast %97 : vector<1x64xf32> to vector<16x64xf32>
    %99 = arith.addf %96, %98 : vector<16x64xf32>
    %cst_34 = arith.constant 0.000000e+00 : f32
    %100 = vector.broadcast %cst_34 : f32 to vector<16x64xf32>
    %101 = arith.maximumf %99, %100 : vector<16x64xf32>
    %c248 = arith.constant 248 : index
    %c0_35 = arith.constant 0 : index
    %102 = vector.load %arg1[%c248, %c0_35] : memref<672x128xf32, #tpu.memory_space<vmem>>, vector<64x32xf32>
    %cst_36 = arith.constant dense<0.000000e+00> : vector<16x32xf32>
    %103 = tpu.matmul %101, %102, %cst_36 {dimension_numbers = #tpu.dot_dimension_numbers<[1], [0], [0], [1], [0, 0, 1, 1], [], []>} : vector<16x64xf32>, vector<64x32xf32>, vector<16x32xf32> -> vector<16x32xf32>
    %c312 = arith.constant 312 : index
    %c0_37 = arith.constant 0 : index
    %104 = vector.load %arg1[%c312, %c0_37] : memref<672x128xf32, #tpu.memory_space<vmem>>, vector<1x32xf32>
    %105 = vector.broadcast %104 : vector<1x32xf32> to vector<16x32xf32>
    %106 = arith.addf %103, %105 : vector<16x32xf32>
    %107 = arith.addf %94, %106 : vector<16x32xf32>
    %c320 = arith.constant 320 : index
    %c0_38 = arith.constant 0 : index
    %108 = vector.load %arg1[%c320, %c0_38] : memref<672x128xf32, #tpu.memory_space<vmem>>, vector<1x32xf32>
    %c328 = arith.constant 328 : index
    %c0_39 = arith.constant 0 : index
    %109 = vector.load %arg1[%c328, %c0_39] : memref<672x128xf32, #tpu.memory_space<vmem>>, vector<1x32xf32>
    %cst_40 = arith.constant dense<0.000000e+00> : vector<16xf32>
    %110 = vector.multi_reduction <add>, %107, %cst_40 [1] : vector<16x32xf32> to vector<16xf32>
    %111 = vector.shape_cast %110 : vector<16xf32> to vector<16x1xf32>
    %cst_41 = arith.constant 3.200000e+01 : f32
    %112 = vector.broadcast %cst_41 : f32 to vector<16x1xf32>
    %113 = arith.divf %111, %112 : vector<16x1xf32>
    %114 = vector.broadcast %113 : vector<16x1xf32> to vector<16x32xf32>
    %115 = arith.subf %107, %114 : vector<16x32xf32>
    %116 = arith.mulf %115, %115 : vector<16x32xf32>
    %cst_42 = arith.constant dense<0.000000e+00> : vector<16xf32>
    %117 = vector.multi_reduction <add>, %116, %cst_42 [1] : vector<16x32xf32> to vector<16xf32>
    %118 = vector.shape_cast %117 : vector<16xf32> to vector<16x1xf32>
    %cst_43 = arith.constant 3.200000e+01 : f32
    %119 = vector.broadcast %cst_43 : f32 to vector<16x1xf32>
    %120 = arith.divf %118, %119 : vector<16x1xf32>
    %121 = vector.broadcast %113 : vector<16x1xf32> to vector<16x32xf32>
    %122 = arith.subf %107, %121 : vector<16x32xf32>
    %cst_44 = arith.constant 9.99999974E-6 : f32
    %123 = vector.broadcast %cst_44 : f32 to vector<16x1xf32>
    %124 = arith.addf %120, %123 : vector<16x1xf32>
    %125 = math.rsqrt %124 : vector<16x1xf32>
    %126 = vector.broadcast %125 : vector<16x1xf32> to vector<16x32xf32>
    %127 = arith.mulf %122, %126 : vector<16x32xf32>
    %128 = vector.broadcast %108 : vector<1x32xf32> to vector<16x32xf32>
    %129 = arith.mulf %127, %128 : vector<16x32xf32>
    %130 = vector.broadcast %109 : vector<1x32xf32> to vector<16x32xf32>
    %131 = arith.addf %129, %130 : vector<16x32xf32>
    %c336 = arith.constant 336 : index
    %c0_45 = arith.constant 0 : index
    %132 = vector.load %arg1[%c336, %c0_45] : memref<672x128xf32, #tpu.memory_space<vmem>>, vector<32x128xf32>
    %cst_46 = arith.constant dense<0.000000e+00> : vector<16x128xf32>
    %133 = tpu.matmul %131, %132, %cst_46 {dimension_numbers = #tpu.dot_dimension_numbers<[1], [0], [0], [1], [0, 0, 1, 1], [], []>} : vector<16x32xf32>, vector<32x128xf32>, vector<16x128xf32> -> vector<16x128xf32>
    %c368 = arith.constant 368 : index
    %c0_47 = arith.constant 0 : index
    %134 = vector.load %arg1[%c368, %c0_47] : memref<672x128xf32, #tpu.memory_space<vmem>>, vector<1x128xf32>
    %135 = vector.broadcast %134 : vector<1x128xf32> to vector<16x128xf32>
    %136 = arith.addf %133, %135 : vector<16x128xf32>
    %137 = vector.extract_strided_slice %136 {offsets = [0, 0], sizes = [16, 32], strides = [1, 1]} : vector<16x128xf32> to vector<16x32xf32>
    %138 = vector.extract_strided_slice %136 {offsets = [0, 32], sizes = [16, 32], strides = [1, 1]} : vector<16x128xf32> to vector<16x32xf32>
    %139 = vector.extract_strided_slice %136 {offsets = [0, 64], sizes = [16, 32], strides = [1, 1]} : vector<16x128xf32> to vector<16x32xf32>
    %140 = vector.extract_strided_slice %136 {offsets = [0, 96], sizes = [16, 32], strides = [1, 1]} : vector<16x128xf32> to vector<16x32xf32>
    %141 = tpu.concatenate %137, %138, %139, %140 in 0 : vector<16x32xf32>, vector<16x32xf32>, vector<16x32xf32>, vector<16x32xf32> -> vector<64x32xf32>
    %142 = vector.extract_strided_slice %141 {offsets = [0, 0], sizes = [64, 8], strides = [1, 1]} : vector<64x32xf32> to vector<64x8xf32>
    %143 = vector.extract_strided_slice %141 {offsets = [0, 8], sizes = [64, 8], strides = [1, 1]} : vector<64x32xf32> to vector<64x8xf32>
    %144 = vector.extract_strided_slice %141 {offsets = [0, 16], sizes = [64, 8], strides = [1, 1]} : vector<64x32xf32> to vector<64x8xf32>
    %cst_48 = arith.constant dense<0.000000e+00> : vector<64x64xf32>
    %145 = tpu.matmul %142, %143, %cst_48 {dimension_numbers = #tpu.dot_dimension_numbers<[1], [1], [0], [0], [0, 0, 1, 0], [], []>} : vector<64x8xf32>, vector<64x8xf32>, vector<64x64xf32> -> vector<64x64xf32>
    %146 = arith.addf %145, %32 : vector<64x64xf32>
    %cst_49 = arith.constant dense<0xFF800000> : vector<64xf32>
    %147 = vector.multi_reduction <maximumf>, %146, %cst_49 [1] : vector<64x64xf32> to vector<64xf32>
    %148 = vector.shape_cast %147 : vector<64xf32> to vector<64x1xf32>
    %149 = vector.broadcast %148 : vector<64x1xf32> to vector<64x64xf32>
    %150 = arith.subf %146, %149 : vector<64x64xf32>
    %151 = math.exp %150 : vector<64x64xf32>
    %cst_50 = arith.constant dense<0.000000e+00> : vector<64xf32>
    %152 = vector.multi_reduction <add>, %151, %cst_50 [1] : vector<64x64xf32> to vector<64xf32>
    %153 = vector.shape_cast %152 : vector<64xf32> to vector<64x1xf32>
    %cst_51 = arith.constant 1.000000e+00 : f32
    %154 = vector.broadcast %cst_51 : f32 to vector<64x1xf32>
    %155 = arith.divf %154, %153 : vector<64x1xf32>
    %156 = vector.broadcast %155 : vector<64x1xf32> to vector<64x64xf32>
    %157 = arith.mulf %151, %156 : vector<64x64xf32>
    %cst_52 = arith.constant dense<0.000000e+00> : vector<64x8xf32>
    %158 = tpu.matmul %157, %144, %cst_52 {dimension_numbers = #tpu.dot_dimension_numbers<[1], [0], [0], [1], [0, 0, 1, 1], [], []>} : vector<64x64xf32>, vector<64x8xf32>, vector<64x8xf32> -> vector<64x8xf32>
    %159 = vector.extract_strided_slice %158 {offsets = [0, 0], sizes = [16, 8], strides = [1, 1]} : vector<64x8xf32> to vector<16x8xf32>
    %160 = vector.extract_strided_slice %158 {offsets = [16, 0], sizes = [16, 8], strides = [1, 1]} : vector<64x8xf32> to vector<16x8xf32>
    %161 = vector.extract_strided_slice %158 {offsets = [32, 0], sizes = [16, 8], strides = [1, 1]} : vector<64x8xf32> to vector<16x8xf32>
    %162 = vector.extract_strided_slice %158 {offsets = [48, 0], sizes = [16, 8], strides = [1, 1]} : vector<64x8xf32> to vector<16x8xf32>
    %163 = tpu.concatenate %159, %160, %161, %162 in 1 : vector<16x8xf32>, vector<16x8xf32>, vector<16x8xf32>, vector<16x8xf32> -> vector<16x32xf32>
    %c376 = arith.constant 376 : index
    %c0_53 = arith.constant 0 : index
    %164 = vector.load %arg1[%c376, %c0_53] : memref<672x128xf32, #tpu.memory_space<vmem>>, vector<32x32xf32>
    %cst_54 = arith.constant dense<0.000000e+00> : vector<16x32xf32>
    %165 = tpu.matmul %163, %164, %cst_54 {dimension_numbers = #tpu.dot_dimension_numbers<[1], [0], [0], [1], [0, 0, 1, 1], [], []>} : vector<16x32xf32>, vector<32x32xf32>, vector<16x32xf32> -> vector<16x32xf32>
    %c408 = arith.constant 408 : index
    %c0_55 = arith.constant 0 : index
    %166 = vector.load %arg1[%c408, %c0_55] : memref<672x128xf32, #tpu.memory_space<vmem>>, vector<1x32xf32>
    %167 = vector.broadcast %166 : vector<1x32xf32> to vector<16x32xf32>
    %168 = arith.addf %165, %167 : vector<16x32xf32>
    %169 = arith.addf %131, %168 : vector<16x32xf32>
    %c416 = arith.constant 416 : index
    %c0_56 = arith.constant 0 : index
    %170 = vector.load %arg1[%c416, %c0_56] : memref<672x128xf32, #tpu.memory_space<vmem>>, vector<1x32xf32>
    %c424 = arith.constant 424 : index
    %c0_57 = arith.constant 0 : index
    %171 = vector.load %arg1[%c424, %c0_57] : memref<672x128xf32, #tpu.memory_space<vmem>>, vector<1x32xf32>
    %cst_58 = arith.constant dense<0.000000e+00> : vector<16xf32>
    %172 = vector.multi_reduction <add>, %169, %cst_58 [1] : vector<16x32xf32> to vector<16xf32>
    %173 = vector.shape_cast %172 : vector<16xf32> to vector<16x1xf32>
    %cst_59 = arith.constant 3.200000e+01 : f32
    %174 = vector.broadcast %cst_59 : f32 to vector<16x1xf32>
    %175 = arith.divf %173, %174 : vector<16x1xf32>
    %176 = vector.broadcast %175 : vector<16x1xf32> to vector<16x32xf32>
    %177 = arith.subf %169, %176 : vector<16x32xf32>
    %178 = arith.mulf %177, %177 : vector<16x32xf32>
    %cst_60 = arith.constant dense<0.000000e+00> : vector<16xf32>
    %179 = vector.multi_reduction <add>, %178, %cst_60 [1] : vector<16x32xf32> to vector<16xf32>
    %180 = vector.shape_cast %179 : vector<16xf32> to vector<16x1xf32>
    %cst_61 = arith.constant 3.200000e+01 : f32
    %181 = vector.broadcast %cst_61 : f32 to vector<16x1xf32>
    %182 = arith.divf %180, %181 : vector<16x1xf32>
    %183 = vector.broadcast %175 : vector<16x1xf32> to vector<16x32xf32>
    %184 = arith.subf %169, %183 : vector<16x32xf32>
    %cst_62 = arith.constant 9.99999974E-6 : f32
    %185 = vector.broadcast %cst_62 : f32 to vector<16x1xf32>
    %186 = arith.addf %182, %185 : vector<16x1xf32>
    %187 = math.rsqrt %186 : vector<16x1xf32>
    %188 = vector.broadcast %187 : vector<16x1xf32> to vector<16x32xf32>
    %189 = arith.mulf %184, %188 : vector<16x32xf32>
    %190 = vector.broadcast %170 : vector<1x32xf32> to vector<16x32xf32>
    %191 = arith.mulf %189, %190 : vector<16x32xf32>
    %192 = vector.broadcast %171 : vector<1x32xf32> to vector<16x32xf32>
    %193 = arith.addf %191, %192 : vector<16x32xf32>
    %c432 = arith.constant 432 : index
    %c0_63 = arith.constant 0 : index
    %194 = vector.load %arg1[%c432, %c0_63] : memref<672x128xf32, #tpu.memory_space<vmem>>, vector<32x64xf32>
    %cst_64 = arith.constant dense<0.000000e+00> : vector<16x64xf32>
    %195 = tpu.matmul %193, %194, %cst_64 {dimension_numbers = #tpu.dot_dimension_numbers<[1], [0], [0], [1], [0, 0, 1, 1], [], []>} : vector<16x32xf32>, vector<32x64xf32>, vector<16x64xf32> -> vector<16x64xf32>
    %c464 = arith.constant 464 : index
    %c0_65 = arith.constant 0 : index
    %196 = vector.load %arg1[%c464, %c0_65] : memref<672x128xf32, #tpu.memory_space<vmem>>, vector<1x64xf32>
    %197 = vector.broadcast %196 : vector<1x64xf32> to vector<16x64xf32>
    %198 = arith.addf %195, %197 : vector<16x64xf32>
    %cst_66 = arith.constant 0.000000e+00 : f32
    %199 = vector.broadcast %cst_66 : f32 to vector<16x64xf32>
    %200 = arith.maximumf %198, %199 : vector<16x64xf32>
    %c472 = arith.constant 472 : index
    %c0_67 = arith.constant 0 : index
    %201 = vector.load %arg1[%c472, %c0_67] : memref<672x128xf32, #tpu.memory_space<vmem>>, vector<64x32xf32>
    %cst_68 = arith.constant dense<0.000000e+00> : vector<16x32xf32>
    %202 = tpu.matmul %200, %201, %cst_68 {dimension_numbers = #tpu.dot_dimension_numbers<[1], [0], [0], [1], [0, 0, 1, 1], [], []>} : vector<16x64xf32>, vector<64x32xf32>, vector<16x32xf32> -> vector<16x32xf32>
    %c536 = arith.constant 536 : index
    %c0_69 = arith.constant 0 : index
    %203 = vector.load %arg1[%c536, %c0_69] : memref<672x128xf32, #tpu.memory_space<vmem>>, vector<1x32xf32>
    %204 = vector.broadcast %203 : vector<1x32xf32> to vector<16x32xf32>
    %205 = arith.addf %202, %204 : vector<16x32xf32>
    %206 = arith.addf %193, %205 : vector<16x32xf32>
    %c544 = arith.constant 544 : index
    %c0_70 = arith.constant 0 : index
    %207 = vector.load %arg1[%c544, %c0_70] : memref<672x128xf32, #tpu.memory_space<vmem>>, vector<1x32xf32>
    %c552 = arith.constant 552 : index
    %c0_71 = arith.constant 0 : index
    %208 = vector.load %arg1[%c552, %c0_71] : memref<672x128xf32, #tpu.memory_space<vmem>>, vector<1x32xf32>
    %cst_72 = arith.constant dense<0.000000e+00> : vector<16xf32>
    %209 = vector.multi_reduction <add>, %206, %cst_72 [1] : vector<16x32xf32> to vector<16xf32>
    %210 = vector.shape_cast %209 : vector<16xf32> to vector<16x1xf32>
    %cst_73 = arith.constant 3.200000e+01 : f32
    %211 = vector.broadcast %cst_73 : f32 to vector<16x1xf32>
    %212 = arith.divf %210, %211 : vector<16x1xf32>
    %213 = vector.broadcast %212 : vector<16x1xf32> to vector<16x32xf32>
    %214 = arith.subf %206, %213 : vector<16x32xf32>
    %215 = arith.mulf %214, %214 : vector<16x32xf32>
    %cst_74 = arith.constant dense<0.000000e+00> : vector<16xf32>
    %216 = vector.multi_reduction <add>, %215, %cst_74 [1] : vector<16x32xf32> to vector<16xf32>
    %217 = vector.shape_cast %216 : vector<16xf32> to vector<16x1xf32>
    %cst_75 = arith.constant 3.200000e+01 : f32
    %218 = vector.broadcast %cst_75 : f32 to vector<16x1xf32>
    %219 = arith.divf %217, %218 : vector<16x1xf32>
    %220 = vector.broadcast %212 : vector<16x1xf32> to vector<16x32xf32>
    %221 = arith.subf %206, %220 : vector<16x32xf32>
    %cst_76 = arith.constant 9.99999974E-6 : f32
    %222 = vector.broadcast %cst_76 : f32 to vector<16x1xf32>
    %223 = arith.addf %219, %222 : vector<16x1xf32>
    %224 = math.rsqrt %223 : vector<16x1xf32>
    %225 = vector.broadcast %224 : vector<16x1xf32> to vector<16x32xf32>
    %226 = arith.mulf %221, %225 : vector<16x32xf32>
    %227 = vector.broadcast %207 : vector<1x32xf32> to vector<16x32xf32>
    %228 = arith.mulf %226, %227 : vector<16x32xf32>
    %229 = vector.broadcast %208 : vector<1x32xf32> to vector<16x32xf32>
    %230 = arith.addf %228, %229 : vector<16x32xf32>
    %231 = vector.extract_strided_slice %230 {offsets = [7, 0], sizes = [1, 32], strides = [1, 1]} : vector<16x32xf32> to vector<1x32xf32>
    %232 = vector.extract_strided_slice %230 {offsets = [15, 0], sizes = [1, 32], strides = [1, 1]} : vector<16x32xf32> to vector<1x32xf32>
    %233 = tpu.concatenate %231, %232 in 0 : vector<1x32xf32>, vector<1x32xf32> -> vector<2x32xf32>
    %c560 = arith.constant 560 : index
    %c0_77 = arith.constant 0 : index
    %234 = vector.load %arg1[%c560, %c0_77] : memref<672x128xf32, #tpu.memory_space<vmem>>, vector<32x64xf32>
    %cst_78 = arith.constant dense<0.000000e+00> : vector<2x64xf32>
    %235 = tpu.matmul %233, %234, %cst_78 {dimension_numbers = #tpu.dot_dimension_numbers<[1], [0], [0], [1], [0, 0, 1, 1], [], []>} : vector<2x32xf32>, vector<32x64xf32>, vector<2x64xf32> -> vector<2x64xf32>
    %c592 = arith.constant 592 : index
    %c0_79 = arith.constant 0 : index
    %236 = vector.load %arg1[%c592, %c0_79] : memref<672x128xf32, #tpu.memory_space<vmem>>, vector<1x64xf32>
    %237 = vector.broadcast %236 : vector<1x64xf32> to vector<2x64xf32>
    %238 = arith.addf %235, %237 : vector<2x64xf32>
    %cst_80 = arith.constant 0.000000e+00 : f32
    %239 = vector.broadcast %cst_80 : f32 to vector<2x64xf32>
    %240 = arith.maximumf %238, %239 : vector<2x64xf32>
    %c600 = arith.constant 600 : index
    %c0_81 = arith.constant 0 : index
    %241 = vector.load %arg1[%c600, %c0_81] : memref<672x128xf32, #tpu.memory_space<vmem>>, vector<64x8xf32>
    %cst_82 = arith.constant dense<0.000000e+00> : vector<2x8xf32>
    %242 = tpu.matmul %240, %241, %cst_82 {dimension_numbers = #tpu.dot_dimension_numbers<[1], [0], [0], [1], [0, 0, 1, 1], [], []>} : vector<2x64xf32>, vector<64x8xf32>, vector<2x8xf32> -> vector<2x8xf32>
    %c664 = arith.constant 664 : index
    %c0_83 = arith.constant 0 : index
    %243 = vector.load %arg1[%c664, %c0_83] : memref<672x128xf32, #tpu.memory_space<vmem>>, vector<1x8xf32>
    %244 = vector.broadcast %243 : vector<1x8xf32> to vector<2x8xf32>
    %245 = arith.addf %242, %244 : vector<2x8xf32>
    %c0_84 = arith.constant 0 : index
    %c0_85 = arith.constant 0 : index
    %246 = vector.load %arg2[%c0_84, %c0_85] : memref<2x8xf32, #tpu.memory_space<vmem>>, vector<2x8xf32>
    tpu.vector_store %arg2[%c0_84, %c0_85], %245 {strides = array<i32>} : memref<2x8xf32, #tpu.memory_space<vmem>>, vector<2x8xf32>,
    return
  }
}

</mosaic_0001>

<llo_original>
// kernel: forward.1
$region0: #{forward.1}
  #allocation0 [shape = 'u32[]', space=smem, size = 0x4, offset = 0x4, fixed_abs, tag = 'smem constant byte address 0x4 - core index']
  #allocation1 [shape = 'u32[144,128]{1,0:T(1,128)}', space=vmem, size = 0x12000, scoped, tag = 'internal scratch']
  %s0 = inlined_call_operand.hbm [shape: f32[16,8], index: 0, kind: input, shape index: {}]
  %s1 = inlined_call_operand.hbm [shape: f32[672,128], index: 1, kind: input, shape index: {}]
  %s2 = inlined_call_operand.vmem [shape: f32[2,8], index: 2, kind: output, shape index: {}]
  %s3 = sld [smem:[#allocation0]]
  $region26: #{forward.1} parent=0
    _
  %s5 = ssub.s32 1, %s3
  %s6 = scalar_select 0, %s5, %s3
  $region1: #{forward.1} parent=0
    #allocation2 [shape = 'u8[8192]{0}', space=vmem, size = 0x2000, scoped, tag = 'input window, operand 0, single buffered']
    #allocation3 [shape = 's32[1]{0}', space=sflag, size = 0x4, scoped, tag = 'scoped memory for forward.1']
    #allocation4 [shape = 'u8[344064]{0}', space=vmem, size = 0x54000, scoped, tag = 'input window, operand 1, single buffered']
    #allocation5 [shape = 's32[1]{0}', space=sflag, size = 0x4, scoped, tag = 'scoped memory for forward.1']
    %7 = vsyncpa [#allocation3], 0
    %8 = vsyncpa [#allocation5], 0
    // Predicated region
    $region2: #{forward.1} parent=1 // pred_check
      _
    $region3: #{forward.1} parent=1 // pred_check_branch
      %10 = sbr.rel (0) target = $region5
    $region4: #{forward.1} parent=1 // pred_region
      %s12 = ssub.s32 256, 256
      %13 = vsyncadd [#allocation3], %s12
      %s14 = sshll.u32 [#allocation2], 4
      %s15 = int_to_ptr.vmem [resolvable:$true] %s14
      %20 = dma.hbm_to_vmem [thread:$0]  %s0, 256, %s15, [#allocation3], 128, 128, 8
    $region5: #{forward.1} parent=1 // pred_fallthru
      _
    // Predicated region
    $region6: #{forward.1} parent=1 // pred_check
      _
    $region7: #{forward.1} parent=1 // pred_check_branch
      %22 = sbr.rel (0) target = $region9
    $region8: #{forward.1} parent=1 // pred_region
      %s24 = ssub.s32 10752, 10752
      %25 = vsyncadd [#allocation5], %s24
      %s26 = sshll.u32 [#allocation4], 4
      %s27 = int_to_ptr.vmem [resolvable:$true] %s26
      %32 = dma.hbm_to_vmem [thread:$0]  %s1, 10752, %s27, [#allocation5], 128, 128, 8
    $region9: #{forward.1} parent=1 // pred_fallthru
      _
    // Predicated region
    $region10: #{forward.1} parent=1 // pred_check
      _
    $region11: #{forward.1} parent=1 // pred_check_branch
      %34 = sbr.rel (0) target = $region13
    $region12: #{forward.1} parent=1 // pred_region
      %35 = dma.done [#allocation3], 256
    $region13: #{forward.1} parent=1 // pred_fallthru
      _
    // Predicated region
    $region14: #{forward.1} parent=1 // pred_check
      _
    $region15: #{forward.1} parent=1 // pred_check_branch
      %37 = sbr.rel (0) target = $region17
    $region16: #{forward.1} parent=1 // pred_region
      %38 = dma.done [#allocation5], 10752
    $region17: #{forward.1} parent=1 // pred_fallthru
      _
    %v39 = vld [vmem:[#allocation2] sm:$0xff]
    %v40 = vld [vmem:[#allocation2 + $0x8] sm:$0xff]
    %v41 = vld [vmem:[#allocation4] sm:$0xff]
    %v42 = vld [vmem:[#allocation4 + $0x8] sm:$0x1]
    %v43 = vlaneseq
    %v44 = vshrl.u32 %v43, 7
    %v45 = vsub.s32 0, %v44
    %v46 = vrot.slane %v42, %v45
    %vm47 = vcmask 64512
    %v49 = vsel %vm47, %v39, 0
    %v52 = vsel %vm47, %v40, 0
    %54 = vmatprep.subr.mxu0 0.0
    %55 = vmatpush1.msra.mxu0 %v41
    %56 = vmatprep.subr.mxu0 0.0
    %57 = vmatpush1.msra.mxu0 0.0
    %58 = vmatprep.subr.mxu0 0.0
    %59 = vmatpush1.msra.mxu0 0.0
    %60 = vmatprep.subr.mxu0 0.0
    %61 = vmatpush1.msra.mxu0 0.0
    %62 = vmatprep.subr.mxu0 0.0
    %63 = vmatpush1.msra.mxu0 0.0
    %64 = vmatprep.subr.mxu0 0.0
    %65 = vmatpush1.msra.mxu0 0.0
    %66 = vmatprep.subr.mxu0 0.0
    %67 = vmatpush1.msra.mxu0 0.0
    %68 = vmatprep.subr.mxu0 0.0
    %69 = vmatpush1.msra.mxu0 0.0
    %70 = vmatprep.subr.mxu0 0.0
    %71 = vmatpush1.msra.mxu0 0.0
    %72 = vmatprep.subr.mxu0 0.0
    %73 = vmatpush1.msra.mxu0 0.0
    %74 = vmatprep.subr.mxu0 0.0
    %75 = vmatpush1.msra.mxu0 0.0
    %76 = vmatprep.subr.mxu0 0.0
    %77 = vmatpush1.msra.mxu0 0.0
    %78 = vmatprep.subr.mxu0 0.0
    %79 = vmatpush1.msra.mxu0 0.0
    %80 = vmatprep.subr.mxu0 0.0
    %81 = vmatpush1.msra.mxu0 0.0
    %82 = vmatprep.subr.mxu0 0.0
    %83 = vmatpush1.msra.mxu0 0.0
    %84 = vmatprep.subr.mxu0 0.0
    %85 = vmatpush1.msra.mxu0 0.0
    %86 = vmatprep.subr.mxu0 0.0
    %87 = vmatpush1.msra.mxu0 0.0
    %88 = vmatprep.subr.mxu0 0.0
    %89 = vmatpush1.msra.mxu0 0.0
    %90 = vmatprep.subr.mxu0 0.0
    %91 = vmatpush1.msra.mxu0 0.0
    %92 = vmatprep.subr.mxu0 0.0
    %93 = vmatpush1.msra.mxu0 0.0
    %94 = vmatprep.subr.mxu0 0.0
    %95 = vmatpush1.msra.mxu0 0.0
    %96 = vmatprep.subr.mxu0 0.0
    %97 = vmatpush1.msra.mxu0 0.0
    %98 = vmatprep.subr.mxu0 0.0
    %99 = vmatpush1.msra.mxu0 0.0
    %100 = vmatprep.subr.mxu0 0.0
    %101 = vmatpush1.msra.mxu0 0.0
    %102 = vmatprep.subr.mxu0 0.0
    %103 = vmatpush1.msra.mxu0 0.0
    %104 = vmatprep.subr.mxu0 0.0
    %105 = vmatpush1.msra.mxu0 0.0
    %106 = vmatprep.subr.mxu0 0.0
    %107 = vmatpush1.msra.mxu0 0.0
    %108 = vmatprep.subr.mxu0 0.0
    %109 = vmatpush1.msra.mxu0 0.0
    %110 = vmatprep.subr.mxu0 0.0
    %111 = vmatpush1.msra.mxu0 0.0
    %112 = vmatprep.subr.mxu0 0.0
    %113 = vmatpush1.msra.mxu0 0.0
    %114 = vmatprep.subr.mxu0 0.0
    %115 = vmatpush1.msra.mxu0 0.0
    %116 = vmatprep.subr.mxu0 0.0
    %117 = vmatpush1.msra.mxu0 0.0
    %118 = vmatprep.mubr.f32.mxu0 0.0
    %119 = vmatmul.mubr.f32.gmra.mrb[0].mxu0 %v49
    %v120 = vpop.f32.mrb[0].mxu0
    %v121 = vadd.f32 %v46, %v120
    %v122 = vpop.f32.mrb[0].mxu0
    %123 = vmatprep.mubr.f32.mxu0 0.0
    %124 = vmatmul.mubr.f32.gmra.mrb[0].mxu0 %v52
    %v125 = vpop.f32.mrb[0].mxu0
    %v126 = vadd.f32 %v46, %v125
    %v127 = vpop.f32.mrb[0].mxu0
    %128 = vdwg.mxu0
    %v129 = vld [vmem:[#allocation4 + $0x10] sm:$0x1]
    %v130 = vld [vmem:[#allocation4 + $0x18] sm:$0x1]
    %vm131 = vcmask 261120
    %v132 = vsel %vm131, %v121, 0.0
    %133 = vadd.xlane.f32.xlu0 %v132
    %v134 = vpop.xlane.xlu0 %133
    %v135 = vsel %vm131, %v126, 0.0
    %136 = vadd.xlane.f32.xlu0 %v135
    %v137 = vpop.xlane.xlu0 %136
    %v138 = vrcp.pop 32.0
    %v139 = vmul.f32 %v134, %v138
    %v140 = vmul.f32 %v137, %v138
    %v141 = vsub.f32 %v121, %v139
    %v142 = vsub.f32 %v126, %v140
    %v143 = vmul.f32 %v141, %v141
    %v144 = vmul.f32 %v142, %v142
    %v145 = vsel %vm131, %v143, 0.0
    %146 = vadd.xlane.f32.xlu0 %v145
    %v147 = vpop.xlane.xlu0 %146
    %v148 = vsel %vm131, %v144, 0.0
    %149 = vadd.xlane.f32.xlu0 %v148
    %v150 = vpop.xlane.xlu0 %149
    %v151 = vmul.f32 %v147, %v138
    %v152 = vmul.f32 %v150, %v138
    %v153 = vadd.f32 %v151, 1e-05
    %v154 = vadd.f32 %v152, 1e-05
    %v155 = vrsqrt.pop %v153
    %v156 = vrsqrt.pop %v154
    %v157 = vmul.f32 %v141, %v155
    %v158 = vmul.f32 %v142, %v156
    %v159 = vlaneseq
    %v160 = vshrl.u32 %v159, 7
    %v161 = vsub.s32 0, %v160
    %v162 = vrot.slane %v129, %v161
    %v163 = vmul.f32 %v157, %v162
    %v164 = vmul.f32 %v158, %v162
    %v165 = vlaneseq
    %v166 = vshrl.u32 %v165, 7
    %v167 = vsub.s32 0, %v166
    %v168 = vrot.slane %v130, %v167
    %v169 = vadd.f32 %v163, %v168
    %v170 = vadd.f32 %v164, %v168
    %v171 = vld [vmem:[#allocation4 + $0x20] sm:$0xff]
    %v172 = vld [vmem:[#allocation4 + $0x28] sm:$0xff]
    %v173 = vadd.f32 %v169, %v171
    %v174 = vadd.f32 %v170, %v172
    %v175 = vld [vmem:[#allocation4 + $0x30] sm:$0xff]
    %v176 = vld [vmem:[#allocation4 + $0x38] sm:$0xff]
    %v177 = vld [vmem:[#allocation4 + $0x40] sm:$0xff]
    %v178 = vld [vmem:[#allocation4 + $0x48] sm:$0xff]
    %v179 = vld [vmem:[#allocation4 + $0x50] sm:$0xff]
    %v180 = vld [vmem:[#allocation4 + $0x58] sm:$0xff]
    %v181 = vld [vmem:[#allocation4 + $0x60] sm:$0xff]
    %v182 = vld [vmem:[#allocation4 + $0x68] sm:$0xff]
    %v183 = vld [vmem:[#allocation4 + $0x70] sm:$0xff]
    %v184 = vld [vmem:[#allocation4 + $0x78] sm:$0xff]
    %v185 = vld [vmem:[#allocation4 + $0x80] sm:$0xff]
    %v186 = vld [vmem:[#allocation4 + $0x88] sm:$0xff]
    %v187 = vld [vmem:[#allocation4 + $0x90] sm:$0x1]
    %v188 = vlaneseq
    %v189 = vshrl.u32 %v188, 7
    %v190 = vsub.s32 0, %v189
    %v191 = vrot.slane %v187, %v190
    %v193 = vsel %vm131, %v173, 0
    %v196 = vsel %vm131, %v174, 0
    %198 = vmatprep.subr.mxu0 0.0
    %199 = vmatpush1.msra.mxu0 %v183
    %200 = vmatprep.subr.mxu0 0.0
    %201 = vmatpush1.msra.mxu0 %v184
    %202 = vmatprep.subr.mxu0 0.0
    %203 = vmatpush1.msra.mxu0 %v185
    %204 = vmatprep.subr.mxu0 0.0
    %205 = vmatpush1.msra.mxu0 %v186
    %206 = vmatprep.subr.mxu0 0.0
    %207 = vmatpush1.msra.mxu0 0.0
    %208 = vmatprep.subr.mxu0 0.0
    %209 = vmatpush1.msra.mxu0 0.0
    %210 = vmatprep.subr.mxu0 0.0
    %211 = vmatpush1.msra.mxu0 0.0
    %212 = vmatprep.subr.mxu0 0.0
    %213 = vmatpush1.msra.mxu0 0.0
    %214 = vmatprep.subr.mxu0 0.0
    %215 = vmatpush1.msra.mxu0 0.0
    %216 = vmatprep.subr.mxu0 0.0
    %217 = vmatpush1.msra.mxu0 0.0
    %218 = vmatprep.subr.mxu0 0.0
    %219 = vmatpush1.msra.mxu0 0.0
    %220 = vmatprep.subr.mxu0 0.0
    %221 = vmatpush1.msra.mxu0 0.0
    %222 = vmatprep.subr.mxu0 0.0
    %223 = vmatpush1.msra.mxu0 0.0
    %224 = vmatprep.subr.mxu0 0.0
    %225 = vmatpush1.msra.mxu0 0.0
    %226 = vmatprep.subr.mxu0 0.0
    %227 = vmatpush1.msra.mxu0 0.0
    %228 = vmatprep.subr.mxu0 0.0
    %229 = vmatpush1.msra.mxu0 0.0
    %230 = vmatprep.subr.mxu0 0.0
    %231 = vmatpush1.msra.mxu0 0.0
    %232 = vmatprep.subr.mxu0 0.0
    %233 = vmatpush1.msra.mxu0 0.0
    %234 = vmatprep.subr.mxu0 0.0
    %235 = vmatpush1.msra.mxu0 0.0
    %236 = vmatprep.subr.mxu0 0.0
    %237 = vmatpush1.msra.mxu0 0.0
    %238 = vmatprep.subr.mxu0 0.0
    %239 = vmatpush1.msra.mxu0 0.0
    %240 = vmatprep.subr.mxu0 0.0
    %241 = vmatpush1.msra.mxu0 0.0
    %242 = vmatprep.subr.mxu0 0.0
    %243 = vmatpush1.msra.mxu0 0.0
    %244 = vmatprep.subr.mxu0 0.0
    %245 = vmatpush1.msra.mxu0 0.0
    %246 = vmatprep.subr.mxu0 0.0
    %247 = vmatpush1.msra.mxu0 0.0
    %248 = vmatprep.subr.mxu0 0.0
    %249 = vmatpush1.msra.mxu0 0.0
    %250 = vmatprep.subr.mxu0 0.0
    %251 = vmatpush1.msra.mxu0 0.0
    %252 = vmatprep.subr.mxu0 0.0
    %253 = vmatpush1.msra.mxu0 0.0
    %254 = vmatprep.subr.mxu0 0.0
    %255 = vmatpush1.msra.mxu0 0.0
    %256 = vmatprep.subr.mxu0 0.0
    %257 = vmatpush1.msra.mxu0 0.0
    %258 = vmatprep.subr.mxu0 0.0
    %259 = vmatpush1.msra.mxu0 0.0
    %260 = vmatprep.subr.mxu0 0.0
    %261 = vmatpush1.msra.mxu0 0.0
    %262 = vmatprep.mubr.f32.mxu0 0.0
    %263 = vmatmul.mubr.f32.gmra.mrb[0].mxu0 %v193
    %v264 = vpop.f32.mrb[0].mxu0
    %v265 = vadd.f32 %v191, %v264
    %v266 = vpop.f32.mrb[0].mxu0
    %267 = vmatprep.mubr.f32.mxu0 0.0
    %268 = vmatmul.mubr.f32.gmra.mrb[0].mxu0 %v196
    %v269 = vpop.f32.mrb[0].mxu0
    %v270 = vadd.f32 %v191, %v269
    %v271 = vpop.f32.mrb[0].mxu0
    %272 = vdwg.mxu0
    %275 = vrot.lane.b32.xlu0 %v265, 96
    %v276 = vpop.permute.xlu0 %275
    %277 = vrot.lane.b32.xlu0 %v270, 96
    %v278 = vpop.permute.xlu0 %277
    %279 = vrot.lane.b32.xlu0 %v265, 64
    %v280 = vpop.permute.xlu0 %279
    %281 = vrot.lane.b32.xlu0 %v270, 64
    %v282 = vpop.permute.xlu0 %281
    %283 = vrot.lane.b32.xlu0 %v265, 32
    %v284 = vpop.permute.xlu0 %283
    %285 = vrot.lane.b32.xlu0 %v270, 32
    %v286 = vpop.permute.xlu0 %285
    %287 = vrot.lane.b32.xlu0 %v265, 120
    %v288 = vpop.permute.xlu0 %287
    %289 = vrot.lane.b32.xlu0 %v270, 120
    %v290 = vpop.permute.xlu0 %289
    %291 = vrot.lane.b32.xlu0 %v276, 120
    %v292 = vpop.permute.xlu0 %291
    %293 = vrot.lane.b32.xlu0 %v278, 120
    %v294 = vpop.permute.xlu0 %293
    %295 = vrot.lane.b32.xlu0 %v280, 120
    %v296 = vpop.permute.xlu0 %295
    %297 = vrot.lane.b32.xlu0 %v282, 120
    %v298 = vpop.permute.xlu0 %297
    %299 = vrot.lane.b32.xlu0 %v284, 120
    %v300 = vpop.permute.xlu0 %299
    %301 = vrot.lane.b32.xlu0 %v286, 120
    %v302 = vpop.permute.xlu0 %301
    %v303 = vsel %vm47, %v265, 0
    %v305 = vsel %vm47, %v270, 0
    %v307 = vsel %vm47, %v276, 0
    %v309 = vsel %vm47, %v278, 0
    %v311 = vsel %vm47, %v280, 0
    %v313 = vsel %vm47, %v282, 0
    %v315 = vsel %vm47, %v284, 0
    %v317 = vsel %vm47, %v286, 0
    %v319 = vsel %vm47, %v288, 0
    %v321 = vsel %vm47, %v290, 0
    %v323 = vsel %vm47, %v292, 0
    %v325 = vsel %vm47, %v294, 0
    %v327 = vsel %vm47, %v296, 0
    %v329 = vsel %vm47, %v298, 0
    %v331 = vsel %vm47, %v300, 0
    %v333 = vsel %vm47, %v302, 0
    %335 = vmatprep.subr.mxu0 0.0
    %336 = vmatpush1.xpose.msra.mxu0 %v319
    %337 = vmatprep.subr.mxu0 0.0
    %338 = vmatpush1.xpose.msra.mxu0 %v321
    %339 = vmatprep.subr.mxu0 0.0
    %340 = vmatpush1.xpose.msra.mxu0 %v323
    %341 = vmatprep.subr.mxu0 0.0
    %342 = vmatpush1.xpose.msra.mxu0 %v325
    %343 = vmatprep.subr.mxu0 0.0
    %344 = vmatpush1.xpose.msra.mxu0 %v327
    %345 = vmatprep.subr.mxu0 0.0
    %346 = vmatpush1.xpose.msra.mxu0 %v329
    %347 = vmatprep.subr.mxu0 0.0
    %348 = vmatpush1.xpose.msra.mxu0 %v331
    %349 = vmatprep.subr.mxu0 0.0
    %350 = vmatpush1.xpose.msra.mxu0 %v333
    %351 = vmatprep.subr.mxu0 0.0
    %352 = vmatpush1.xpose.msra.mxu0 0.0
    %353 = vmatprep.subr.mxu0 0.0
    %354 = vmatpush1.xpose.msra.mxu0 0.0
    %355 = vmatprep.subr.mxu0 0.0
    %356 = vmatpush1.xpose.msra.mxu0 0.0
    %357 = vmatprep.subr.mxu0 0.0
    %358 = vmatpush1.xpose.msra.mxu0 0.0
    %359 = vmatprep.subr.mxu0 0.0
    %360 = vmatpush1.xpose.msra.mxu0 0.0
    %361 = vmatprep.subr.mxu0 0.0
    %362 = vmatpush1.xpose.msra.mxu0 0.0
    %363 = vmatprep.subr.mxu0 0.0
    %364 = vmatpush1.xpose.msra.mxu0 0.0
    %365 = vmatprep.subr.mxu0 0.0
    %366 = vmatpush1.xpose.msra.mxu0 0.0
    %367 = vmatprep.subr.mxu0 0.0
    %368 = vmatpush1.xpose.msra.mxu0 0.0
    %369 = vmatprep.subr.mxu0 0.0
    %370 = vmatpush1.xpose.msra.mxu0 0.0
    %371 = vmatprep.subr.mxu0 0.0
    %372 = vmatpush1.xpose.msra.mxu0 0.0
    %373 = vmatprep.subr.mxu0 0.0
    %374 = vmatpush1.xpose.msra.mxu0 0.0
    %375 = vmatprep.subr.mxu0 0.0
    %376 = vmatpush1.xpose.msra.mxu0 0.0
    %377 = vmatprep.subr.mxu0 0.0
    %378 = vmatpush1.xpose.msra.mxu0 0.0
    %379 = vmatprep.subr.mxu0 0.0
    %380 = vmatpush1.xpose.msra.mxu0 0.0
    %381 = vmatprep.subr.mxu0 0.0
    %382 = vmatpush1.xpose.msra.mxu0 0.0
    %383 = vmatprep.subr.mxu0 0.0
    %384 = vmatpush1.xpose.msra.mxu0 0.0
    %385 = vmatprep.subr.mxu0 0.0
    %386 = vmatpush1.xpose.msra.mxu0 0.0
    %387 = vmatprep.subr.mxu0 0.0
    %388 = vmatpush1.xpose.msra.mxu0 0.0
    %389 = vmatprep.subr.mxu0 0.0
    %390 = vmatpush1.xpose.msra.mxu0 0.0
    %391 = vmatprep.subr.mxu0 0.0
    %392 = vmatpush1.xpose.msra.mxu0 0.0
    %393 = vmatprep.subr.mxu0 0.0
    %394 = vmatpush1.xpose.msra.mxu0 0.0
    %395 = vmatprep.subr.mxu0 0.0
    %396 = vmatpush1.xpose.msra.mxu0 0.0
    %397 = vmatprep.subr.mxu0 0.0
    %398 = vmatpush1.xpose.msra.mxu0 0.0
    %399 = vmatprep.mubr.f32.mxu0 0.0
    %400 = vmatmul.mubr.f32.gmra.mrb[0].mxu0 %v303
    %v401 = vpop.f32.mrb[0].mxu0
    %v402 = vadd.f32 %v175, %v401
    %v403 = vpop.f32.mrb[0].mxu0
    %404 = vmatprep.mubr.f32.mxu0 0.0
    %405 = vmatmul.mubr.f32.gmra.mrb[0].mxu0 %v305
    %v406 = vpop.f32.mrb[0].mxu0
    %v407 = vadd.f32 %v176, %v406
    %v408 = vpop.f32.mrb[0].mxu0
    %409 = vmatprep.mubr.f32.mxu0 0.0
    %410 = vmatmul.mubr.f32.gmra.mrb[0].mxu0 %v307
    %v411 = vpop.f32.mrb[0].mxu0
    %v412 = vadd.f32 %v177, %v411
    %v413 = vpop.f32.mrb[0].mxu0
    %414 = vmatprep.mubr.f32.mxu0 0.0
    %415 = vmatmul.mubr.f32.gmra.mrb[0].mxu0 %v309
    %v416 = vpop.f32.mrb[0].mxu0
    %v417 = vadd.f32 %v178, %v416
    %v418 = vpop.f32.mrb[0].mxu0
    %419 = vmatprep.mubr.f32.mxu0 0.0
    %420 = vmatmul.mubr.f32.gmra.mrb[0].mxu0 %v311
    %v421 = vpop.f32.mrb[0].mxu0
    %v422 = vadd.f32 %v179, %v421
    %v423 = vpop.f32.mrb[0].mxu0
    %424 = vmatprep.mubr.f32.mxu0 0.0
    %425 = vmatmul.mubr.f32.gmra.mrb[0].mxu0 %v313
    %v426 = vpop.f32.mrb[0].mxu0
    %v427 = vadd.f32 %v180, %v426
    %v428 = vpop.f32.mrb[0].mxu0
    %429 = vmatprep.mubr.f32.mxu0 0.0
    %430 = vmatmul.mubr.f32.gmra.mrb[0].mxu0 %v315
    %v431 = vpop.f32.mrb[0].mxu0
    %v432 = vadd.f32 %v181, %v431
    %v433 = vpop.f32.mrb[0].mxu0
    %434 = vmatprep.mubr.f32.mxu0 0.0
    %435 = vmatmul.mubr.f32.gmra.mrb[0].mxu0 %v317
    %v436 = vpop.f32.mrb[0].mxu0
    %v437 = vadd.f32 %v182, %v436
    %v438 = vpop.f32.mrb[0].mxu0
    %439 = vdwg.mxu0
    %vm440 = vcmask 523264
    %v441 = vsel %vm440, %v402, -inf
    %442 = vmax.xlane.f32.xlu0 %v441
    %v443 = vpop.xlane.xlu0 %442
    %v444 = vsel %vm440, %v407, -inf
    %445 = vmax.xlane.f32.xlu0 %v444
    %v446 = vpop.xlane.xlu0 %445
    %v447 = vsel %vm440, %v412, -inf
    %448 = vmax.xlane.f32.xlu0 %v447
    %v449 = vpop.xlane.xlu0 %448
    %v450 = vsel %vm440, %v417, -inf
    %451 = vmax.xlane.f32.xlu0 %v450
    %v452 = vpop.xlane.xlu0 %451
    %v453 = vsel %vm440, %v422, -inf
    %454 = vmax.xlane.f32.xlu0 %v453
    %v455 = vpop.xlane.xlu0 %454
    %v456 = vsel %vm440, %v427, -inf
    %457 = vmax.xlane.f32.xlu0 %v456
    %v458 = vpop.xlane.xlu0 %457
    %v459 = vsel %vm440, %v432, -inf
    %460 = vmax.xlane.f32.xlu0 %v459
    %v461 = vpop.xlane.xlu0 %460
    %v462 = vsel %vm440, %v437, -inf
    %463 = vmax.xlane.f32.xlu0 %v462
    %v464 = vpop.xlane.xlu0 %463
    %v465 = vsub.f32 %v402, %v443
    %v466 = vsub.f32 %v407, %v446
    %v467 = vsub.f32 %v412, %v449
    %v468 = vsub.f32 %v417, %v452
    %v469 = vsub.f32 %v422, %v455
    %v470 = vsub.f32 %v427, %v458
    %v471 = vsub.f32 %v432, %v461
    %v472 = vsub.f32 %v437, %v464
    %v473 = vmul.f32 %v465, 1.442695
    %v474 = vpow.pop %v473
    %v475 = vmul.f32 %v466, 1.442695
    %v476 = vpow.pop %v475
    %v477 = vmul.f32 %v467, 1.442695
    %v478 = vpow.pop %v477
    %v479 = vmul.f32 %v468, 1.442695
    %v480 = vpow.pop %v479
    %v481 = vmul.f32 %v469, 1.442695
    %v482 = vpow.pop %v481
    %v483 = vmul.f32 %v470, 1.442695
    %v484 = vpow.pop %v483
    %v485 = vmul.f32 %v471, 1.442695
    %v486 = vpow.pop %v485
    %v487 = vmul.f32 %v472, 1.442695
    %v488 = vpow.pop %v487
    %v489 = vsel %vm440, %v474, 0.0
    %490 = vadd.xlane.f32.xlu0 %v489
    %v491 = vpop.xlane.xlu0 %490
    %v492 = vsel %vm440, %v476, 0.0
    %493 = vadd.xlane.f32.xlu0 %v492
    %v494 = vpop.xlane.xlu0 %493
    %v495 = vsel %vm440, %v478, 0.0
    %496 = vadd.xlane.f32.xlu0 %v495
    %v497 = vpop.xlane.xlu0 %496
    %v498 = vsel %vm440, %v480, 0.0
    %499 = vadd.xlane.f32.xlu0 %v498
    %v500 = vpop.xlane.xlu0 %499
    %v501 = vsel %vm440, %v482, 0.0
    %502 = vadd.xlane.f32.xlu0 %v501
    %v503 = vpop.xlane.xlu0 %502
    %v504 = vsel %vm440, %v484, 0.0
    %505 = vadd.xlane.f32.xlu0 %v504
    %v506 = vpop.xlane.xlu0 %505
    %v507 = vsel %vm440, %v486, 0.0
    %508 = vadd.xlane.f32.xlu0 %v507
    %v509 = vpop.xlane.xlu0 %508
    %v510 = vsel %vm440, %v488, 0.0
    %511 = vadd.xlane.f32.xlu0 %v510
    %v512 = vpop.xlane.xlu0 %511
    %v513 = vrcp.pop %v491
    %v514 = vmul.f32 1.0, %v513
    %v515 = vrcp.pop %v494
    %v516 = vmul.f32 1.0, %v515
    %v517 = vrcp.pop %v497
    %v518 = vmul.f32 1.0, %v517
    %v519 = vrcp.pop %v500
    %v520 = vmul.f32 1.0, %v519
    %v521 = vrcp.pop %v503
    %v522 = vmul.f32 1.0, %v521
    %v523 = vrcp.pop %v506
    %v524 = vmul.f32 1.0, %v523
    %v525 = vrcp.pop %v509
    %v526 = vmul.f32 1.0, %v525
    %v527 = vrcp.pop %v512
    %v528 = vmul.f32 1.0, %v527
    %v529 = vmul.f32 %v474, %v514
    %v530 = vmul.f32 %v476, %v516
    %v531 = vmul.f32 %v478, %v518
    %v532 = vmul.f32 %v480, %v520
    %v533 = vmul.f32 %v482, %v522
    %v534 = vmul.f32 %v484, %v524
    %v535 = vmul.f32 %v486, %v526
    %v536 = vmul.f32 %v488, %v528
    %537 = vrot.lane.b32.xlu0 %v265, 112
    %v538 = vpop.permute.xlu0 %537
    %539 = vrot.lane.b32.xlu0 %v270, 112
    %v540 = vpop.permute.xlu0 %539
    %541 = vrot.lane.b32.xlu0 %v276, 112
    %v542 = vpop.permute.xlu0 %541
    %543 = vrot.lane.b32.xlu0 %v278, 112
    %v544 = vpop.permute.xlu0 %543
    %545 = vrot.lane.b32.xlu0 %v280, 112
    %v546 = vpop.permute.xlu0 %545
    %547 = vrot.lane.b32.xlu0 %v282, 112
    %v548 = vpop.permute.xlu0 %547
    %549 = vrot.lane.b32.xlu0 %v284, 112
    %v550 = vpop.permute.xlu0 %549
    %551 = vrot.lane.b32.xlu0 %v286, 112
    %v552 = vpop.permute.xlu0 %551
    %v562 = vsel %vm440, %v529, 0
    %v565 = vsel %vm440, %v530, 0
    %v568 = vsel %vm440, %v531, 0
    %v571 = vsel %vm440, %v532, 0
    %v574 = vsel %vm440, %v533, 0
    %v577 = vsel %vm440, %v534, 0
    %v580 = vsel %vm440, %v535, 0
    %v583 = vsel %vm440, %v536, 0
    %585 = vmatprep.subr.mxu0 0.0
    %586 = vmatpush1.msra.mxu0 %v538
    %587 = vmatprep.subr.mxu0 0.0
    %588 = vmatpush1.msra.mxu0 %v540
    %589 = vmatprep.subr.mxu0 0.0
    %590 = vmatpush1.msra.mxu0 %v542
    %591 = vmatprep.subr.mxu0 0.0
    %592 = vmatpush1.msra.mxu0 %v544
    %593 = vmatprep.subr.mxu0 0.0
    %594 = vmatpush1.msra.mxu0 %v546
    %595 = vmatprep.subr.mxu0 0.0
    %596 = vmatpush1.msra.mxu0 %v548
    %597 = vmatprep.subr.mxu0 0.0
    %598 = vmatpush1.msra.mxu0 %v550
    %599 = vmatprep.subr.mxu0 0.0
    %600 = vmatpush1.msra.mxu0 %v552
    %601 = vmatprep.subr.mxu0 0.0
    %602 = vmatpush1.msra.mxu0 0.0
    %603 = vmatprep.subr.mxu0 0.0
    %604 = vmatpush1.msra.mxu0 0.0
    %605 = vmatprep.subr.mxu0 0.0
    %606 = vmatpush1.msra.mxu0 0.0
    %607 = vmatprep.subr.mxu0 0.0
    %608 = vmatpush1.msra.mxu0 0.0
    %609 = vmatprep.subr.mxu0 0.0
    %610 = vmatpush1.msra.mxu0 0.0
    %611 = vmatprep.subr.mxu0 0.0
    %612 = vmatpush1.msra.mxu0 0.0
    %613 = vmatprep.subr.mxu0 0.0
    %614 = vmatpush1.msra.mxu0 0.0
    %615 = vmatprep.subr.mxu0 0.0
    %616 = vmatpush1.msra.mxu0 0.0
    %617 = vmatprep.subr.mxu0 0.0
    %618 = vmatpush1.msra.mxu0 0.0
    %619 = vmatprep.subr.mxu0 0.0
    %620 = vmatpush1.msra.mxu0 0.0
    %621 = vmatprep.subr.mxu0 0.0
    %622 = vmatpush1.msra.mxu0 0.0
    %623 = vmatprep.subr.mxu0 0.0
    %624 = vmatpush1.msra.mxu0 0.0
    %625 = vmatprep.subr.mxu0 0.0
    %626 = vmatpush1.msra.mxu0 0.0
    %627 = vmatprep.subr.mxu0 0.0
    %628 = vmatpush1.msra.mxu0 0.0
    %629 = vmatprep.subr.mxu0 0.0
    %630 = vmatpush1.msra.mxu0 0.0
    %631 = vmatprep.subr.mxu0 0.0
    %632 = vmatpush1.msra.mxu0 0.0
    %633 = vmatprep.subr.mxu0 0.0
    %634 = vmatpush1.msra.mxu0 0.0
    %635 = vmatprep.subr.mxu0 0.0
    %636 = vmatpush1.msra.mxu0 0.0
    %637 = vmatprep.subr.mxu0 0.0
    %638 = vmatpush1.msra.mxu0 0.0
    %639 = vmatprep.subr.mxu0 0.0
    %640 = vmatpush1.msra.mxu0 0.0
    %641 = vmatprep.subr.mxu0 0.0
    %642 = vmatpush1.msra.mxu0 0.0
    %643 = vmatprep.subr.mxu0 0.0
    %644 = vmatpush1.msra.mxu0 0.0
    %645 = vmatprep.subr.mxu0 0.0
    %646 = vmatpush1.msra.mxu0 0.0
    %647 = vmatprep.subr.mxu0 0.0
    %648 = vmatpush1.msra.mxu0 0.0
    %649 = vmatprep.mubr.f32.mxu0 0.0
    %650 = vmatmul.mubr.f32.gmra.mrb[0].mxu0 %v562
    %v651 = vpop.f32.mrb[0].mxu0
    %v652 = vadd.f32 0.0, %v651
    %v653 = vpop.f32.mrb[0].mxu0
    %654 = vmatprep.mubr.f32.mxu0 0.0
    %655 = vmatmul.mubr.f32.gmra.mrb[0].mxu0 %v565
    %v656 = vpop.f32.mrb[0].mxu0
    %v657 = vadd.f32 0.0, %v656
    %v658 = vpop.f32.mrb[0].mxu0
    %659 = vmatprep.mubr.f32.mxu0 0.0
    %660 = vmatmul.mubr.f32.gmra.mrb[0].mxu0 %v568
    %v661 = vpop.f32.mrb[0].mxu0
    %v662 = vadd.f32 0.0, %v661
    %v663 = vpop.f32.mrb[0].mxu0
    %664 = vmatprep.mubr.f32.mxu0 0.0
    %665 = vmatmul.mubr.f32.gmra.mrb[0].mxu0 %v571
    %v666 = vpop.f32.mrb[0].mxu0
    %v667 = vadd.f32 0.0, %v666
    %v668 = vpop.f32.mrb[0].mxu0
    %669 = vmatprep.mubr.f32.mxu0 0.0
    %670 = vmatmul.mubr.f32.gmra.mrb[0].mxu0 %v574
    %v671 = vpop.f32.mrb[0].mxu0
    %v672 = vadd.f32 0.0, %v671
    %v673 = vpop.f32.mrb[0].mxu0
    %674 = vmatprep.mubr.f32.mxu0 0.0
    %675 = vmatmul.mubr.f32.gmra.mrb[0].mxu0 %v577
    %v676 = vpop.f32.mrb[0].mxu0
    %v677 = vadd.f32 0.0, %v676
    %v678 = vpop.f32.mrb[0].mxu0
    %679 = vmatprep.mubr.f32.mxu0 0.0
    %680 = vmatmul.mubr.f32.gmra.mrb[0].mxu0 %v580
    %v681 = vpop.f32.mrb[0].mxu0
    %v682 = vadd.f32 0.0, %v681
    %v683 = vpop.f32.mrb[0].mxu0
    %684 = vmatprep.mubr.f32.mxu0 0.0
    %685 = vmatmul.mubr.f32.gmra.mrb[0].mxu0 %v583
    %v686 = vpop.f32.mrb[0].mxu0
    %v687 = vadd.f32 0.0, %v686
    %v688 = vpop.f32.mrb[0].mxu0
    %689 = vdwg.mxu0
    %692 = vrot.lane.b32.xlu0 %v662, 8
    %v693 = vpop.permute.xlu0 %692
    %694 = vrot.lane.b32.xlu0 %v667, 8
    %v695 = vpop.permute.xlu0 %694
    %700 = vrot.lane.b32.xlu0 %v672, 16
    %v701 = vpop.permute.xlu0 %700
    %702 = vrot.lane.b32.xlu0 %v677, 16
    %v703 = vpop.permute.xlu0 %702
    %708 = vrot.lane.b32.xlu0 %v682, 24
    %v709 = vpop.permute.xlu0 %708
    %710 = vrot.lane.b32.xlu0 %v687, 24
    %v711 = vpop.permute.xlu0 %710
    %v714 = vsel %vm47, %v652, %v693
    %v715 = vsel %vm47, %v657, %v695
    %vm716 = vcmask 130048
    %v717 = vsel %vm716, %v714, %v701
    %v718 = vsel %vm716, %v715, %v703
    %vm719 = vcmask 195584
    %v720 = vsel %vm719, %v717, %v709
    %v721 = vsel %vm719, %v718, %v711
    %v722 = vld [vmem:[#allocation4 + $0x98] sm:$0xff]
    %v723 = vld [vmem:[#allocation4 + $0xa0] sm:$0xff]
    %v724 = vld [vmem:[#allocation4 + $0xa8] sm:$0xff]
    %v725 = vld [vmem:[#allocation4 + $0xb0] sm:$0xff]
    %v726 = vld [vmem:[#allocation4 + $0xb8] sm:$0x1]
    %v727 = vlaneseq
    %v728 = vshrl.u32 %v727, 7
    %v729 = vsub.s32 0, %v728
    %v730 = vrot.slane %v726, %v729
    %v732 = vsel %vm131, %v720, 0
    %v735 = vsel %vm131, %v721, 0
    %737 = vmatprep.subr.mxu0 0.0
    %738 = vmatpush1.msra.mxu0 %v722
    %739 = vmatprep.subr.mxu0 0.0
    %740 = vmatpush1.msra.mxu0 %v723
    %741 = vmatprep.subr.mxu0 0.0
    %742 = vmatpush1.msra.mxu0 %v724
    %743 = vmatprep.subr.mxu0 0.0
    %744 = vmatpush1.msra.mxu0 %v725
    %745 = vmatprep.subr.mxu0 0.0
    %746 = vmatpush1.msra.mxu0 0.0
    %747 = vmatprep.subr.mxu0 0.0
    %748 = vmatpush1.msra.mxu0 0.0
    %749 = vmatprep.subr.mxu0 0.0
    %750 = vmatpush1.msra.mxu0 0.0
    %751 = vmatprep.subr.mxu0 0.0
    %752 = vmatpush1.msra.mxu0 0.0
    %753 = vmatprep.subr.mxu0 0.0
    %754 = vmatpush1.msra.mxu0 0.0
    %755 = vmatprep.subr.mxu0 0.0
    %756 = vmatpush1.msra.mxu0 0.0
    %757 = vmatprep.subr.mxu0 0.0
    %758 = vmatpush1.msra.mxu0 0.0
    %759 = vmatprep.subr.mxu0 0.0
    %760 = vmatpush1.msra.mxu0 0.0
    %761 = vmatprep.subr.mxu0 0.0
    %762 = vmatpush1.msra.mxu0 0.0
    %763 = vmatprep.subr.mxu0 0.0
    %764 = vmatpush1.msra.mxu0 0.0
    %765 = vmatprep.subr.mxu0 0.0
    %766 = vmatpush1.msra.mxu0 0.0
    %767 = vmatprep.subr.mxu0 0.0
    %768 = vmatpush1.msra.mxu0 0.0
    %769 = vmatprep.subr.mxu0 0.0
    %770 = vmatpush1.msra.mxu0 0.0
    %771 = vmatprep.subr.mxu0 0.0
    %772 = vmatpush1.msra.mxu0 0.0
    %773 = vmatprep.subr.mxu0 0.0
    %774 = vmatpush1.msra.mxu0 0.0
    %775 = vmatprep.subr.mxu0 0.0
    %776 = vmatpush1.msra.mxu0 0.0
    %777 = vmatprep.subr.mxu0 0.0
    %778 = vmatpush1.msra.mxu0 0.0
    %779 = vmatprep.subr.mxu0 0.0
    %780 = vmatpush1.msra.mxu0 0.0
    %781 = vmatprep.subr.mxu0 0.0
    %782 = vmatpush1.msra.mxu0 0.0
    %783 = vmatprep.subr.mxu0 0.0
    %784 = vmatpush1.msra.mxu0 0.0
    %785 = vmatprep.subr.mxu0 0.0
    %786 = vmatpush1.msra.mxu0 0.0
    %787 = vmatprep.subr.mxu0 0.0
    %788 = vmatpush1.msra.mxu0 0.0
    %789 = vmatprep.subr.mxu0 0.0
    %790 = vmatpush1.msra.mxu0 0.0
    %791 = vmatprep.subr.mxu0 0.0
    %792 = vmatpush1.msra.mxu0 0.0
    %793 = vmatprep.subr.mxu0 0.0
    %794 = vmatpush1.msra.mxu0 0.0
    %795 = vmatprep.subr.mxu0 0.0
    %796 = vmatpush1.msra.mxu0 0.0
    %797 = vmatprep.subr.mxu0 0.0
    %798 = vmatpush1.msra.mxu0 0.0
    %799 = vmatprep.subr.mxu0 0.0
    %800 = vmatpush1.msra.mxu0 0.0
    %801 = vmatprep.mubr.f32.mxu0 0.0
    %802 = vmatmul.mubr.f32.gmra.mrb[0].mxu0 %v732
    %v803 = vpop.f32.mrb[0].mxu0
    %v804 = vadd.f32 %v730, %v803
    %v805 = vpop.f32.mrb[0].mxu0
    %806 = vmatprep.mubr.f32.mxu0 0.0
    %807 = vmatmul.mubr.f32.gmra.mrb[0].mxu0 %v735
    %v808 = vpop.f32.mrb[0].mxu0
    %v809 = vadd.f32 %v730, %v808
    %v810 = vpop.f32.mrb[0].mxu0
    %811 = vdwg.mxu0
    %v812 = vadd.f32 %v173, %v804
    %v813 = vadd.f32 %v174, %v809
    %v814 = vld [vmem:[#allocation4 + $0xc0] sm:$0x1]
    %v815 = vld [vmem:[#allocation4 + $0xc8] sm:$0x1]
    %v816 = vsel %vm131, %v812, 0.0
    %817 = vadd.xlane.f32.xlu0 %v816
    %v818 = vpop.xlane.xlu0 %817
    %v819 = vsel %vm131, %v813, 0.0
    %820 = vadd.xlane.f32.xlu0 %v819
    %v821 = vpop.xlane.xlu0 %820
    %v822 = vmul.f32 %v818, %v138
    %v823 = vmul.f32 %v821, %v138
    %v824 = vsub.f32 %v812, %v822
    %v825 = vsub.f32 %v813, %v823
    %v826 = vmul.f32 %v824, %v824
    %v827 = vmul.f32 %v825, %v825
    %v828 = vsel %vm131, %v826, 0.0
    %829 = vadd.xlane.f32.xlu0 %v828
    %v830 = vpop.xlane.xlu0 %829
    %v831 = vsel %vm131, %v827, 0.0
    %832 = vadd.xlane.f32.xlu0 %v831
    %v833 = vpop.xlane.xlu0 %832
    %v834 = vmul.f32 %v830, %v138
    %v835 = vmul.f32 %v833, %v138
    %v836 = vadd.f32 %v834, 1e-05
    %v837 = vadd.f32 %v835, 1e-05
    %v838 = vrsqrt.pop %v836
    %v839 = vrsqrt.pop %v837
    %v840 = vmul.f32 %v824, %v838
    %v841 = vmul.f32 %v825, %v839
    %v842 = vlaneseq
    %v843 = vshrl.u32 %v842, 7
    %v844 = vsub.s32 0, %v843
    %v845 = vrot.slane %v814, %v844
    %v846 = vmul.f32 %v840, %v845
    %v847 = vmul.f32 %v841, %v845
    %v848 = vlaneseq
    %v849 = vshrl.u32 %v848, 7
    %v850 = vsub.s32 0, %v849
    %v851 = vrot.slane %v815, %v850
    %v852 = vadd.f32 %v846, %v851
    %v853 = vadd.f32 %v847, %v851
    %v854 = vld [vmem:[#allocation4 + $0xd0] sm:$0xff]
    %v855 = vld [vmem:[#allocation4 + $0xd8] sm:$0xff]
    %v856 = vld [vmem:[#allocation4 + $0xe0] sm:$0xff]
    %v857 = vld [vmem:[#allocation4 + $0xe8] sm:$0xff]
    %v858 = vld [vmem:[#allocation4 + $0xf0] sm:$0x1]
    %v859 = vlaneseq
    %v860 = vshrl.u32 %v859, 7
    %v861 = vsub.s32 0, %v860
    %v862 = vrot.slane %v858, %v861
    %v864 = vsel %vm131, %v852, 0
    %v867 = vsel %vm131, %v853, 0
    %869 = vmatprep.subr.mxu0 0.0
    %870 = vmatpush1.msra.mxu0 %v854
    %871 = vmatprep.subr.mxu0 0.0
    %872 = vmatpush1.msra.mxu0 %v855
    %873 = vmatprep.subr.mxu0 0.0
    %874 = vmatpush1.msra.mxu0 %v856
    %875 = vmatprep.subr.mxu0 0.0
    %876 = vmatpush1.msra.mxu0 %v857
    %877 = vmatprep.subr.mxu0 0.0
    %878 = vmatpush1.msra.mxu0 0.0
    %879 = vmatprep.subr.mxu0 0.0
    %880 = vmatpush1.msra.mxu0 0.0
    %881 = vmatprep.subr.mxu0 0.0
    %882 = vmatpush1.msra.mxu0 0.0
    %883 = vmatprep.subr.mxu0 0.0
    %884 = vmatpush1.msra.mxu0 0.0
    %885 = vmatprep.subr.mxu0 0.0
    %886 = vmatpush1.msra.mxu0 0.0
    %887 = vmatprep.subr.mxu0 0.0
    %888 = vmatpush1.msra.mxu0 0.0
    %889 = vmatprep.subr.mxu0 0.0
    %890 = vmatpush1.msra.mxu0 0.0
    %891 = vmatprep.subr.mxu0 0.0
    %892 = vmatpush1.msra.mxu0 0.0
    %893 = vmatprep.subr.mxu0 0.0
    %894 = vmatpush1.msra.mxu0 0.0
    %895 = vmatprep.subr.mxu0 0.0
    %896 = vmatpush1.msra.mxu0 0.0
    %897 = vmatprep.subr.mxu0 0.0
    %898 = vmatpush1.msra.mxu0 0.0
    %899 = vmatprep.subr.mxu0 0.0
    %900 = vmatpush1.msra.mxu0 0.0
    %901 = vmatprep.subr.mxu0 0.0
    %902 = vmatpush1.msra.mxu0 0.0
    %903 = vmatprep.subr.mxu0 0.0
    %904 = vmatpush1.msra.mxu0 0.0
    %905 = vmatprep.subr.mxu0 0.0
    %906 = vmatpush1.msra.mxu0 0.0
    %907 = vmatprep.subr.mxu0 0.0
    %908 = vmatpush1.msra.mxu0 0.0
    %909 = vmatprep.subr.mxu0 0.0
    %910 = vmatpush1.msra.mxu0 0.0
    %911 = vmatprep.subr.mxu0 0.0
    %912 = vmatpush1.msra.mxu0 0.0
    %913 = vmatprep.subr.mxu0 0.0
    %914 = vmatpush1.msra.mxu0 0.0
    %915 = vmatprep.subr.mxu0 0.0
    %916 = vmatpush1.msra.mxu0 0.0
    %917 = vmatprep.subr.mxu0 0.0
    %918 = vmatpush1.msra.mxu0 0.0
    %919 = vmatprep.subr.mxu0 0.0
    %920 = vmatpush1.msra.mxu0 0.0
    %921 = vmatprep.subr.mxu0 0.0
    %922 = vmatpush1.msra.mxu0 0.0
    %923 = vmatprep.subr.mxu0 0.0
    %924 = vmatpush1.msra.mxu0 0.0
    %925 = vmatprep.subr.mxu0 0.0
    %926 = vmatpush1.msra.mxu0 0.0
    %927 = vmatprep.subr.mxu0 0.0
    %928 = vmatpush1.msra.mxu0 0.0
    %929 = vmatprep.subr.mxu0 0.0
    %930 = vmatpush1.msra.mxu0 0.0
    %931 = vmatprep.subr.mxu0 0.0
    %932 = vmatpush1.msra.mxu0 0.0
    %933 = vmatprep.mubr.f32.mxu0 0.0
    %934 = vmatmul.mubr.f32.gmra.mrb[0].mxu0 %v864
    %v935 = vpop.f32.mrb[0].mxu0
    %v936 = vadd.f32 %v862, %v935
    %v937 = vpop.f32.mrb[0].mxu0
    %938 = vmatprep.mubr.f32.mxu0 0.0
    %939 = vmatmul.mubr.f32.gmra.mrb[0].mxu0 %v867
    %v940 = vpop.f32.mrb[0].mxu0
    %v941 = vadd.f32 %v862, %v940
    %v942 = vpop.f32.mrb[0].mxu0
    %943 = vdwg.mxu0
    %v944 = vmax.f32 %v936, 0.0
    %v945 = vmax.f32 %v941, 0.0
    %v946 = vld [vmem:[#allocation4 + $0xf8] sm:$0xff]
    %v947 = vld [vmem:[#allocation4 + $0x100] sm:$0xff]
    %v948 = vld [vmem:[#allocation4 + $0x108] sm:$0xff]
    %v949 = vld [vmem:[#allocation4 + $0x110] sm:$0xff]
    %v950 = vld [vmem:[#allocation4 + $0x118] sm:$0xff]
    %v951 = vld [vmem:[#allocation4 + $0x120] sm:$0xff]
    %v952 = vld [vmem:[#allocation4 + $0x128] sm:$0xff]
    %v953 = vld [vmem:[#allocation4 + $0x130] sm:$0xff]
    %v954 = vld [vmem:[#allocation4 + $0x138] sm:$0x1]
    %v955 = vlaneseq
    %v956 = vshrl.u32 %v955, 7
    %v957 = vsub.s32 0, %v956
    %v958 = vrot.slane %v954, %v957
    %v960 = vsel %vm440, %v944, 0
    %v963 = vsel %vm440, %v945, 0
    %965 = vmatprep.subr.mxu0 0.0
    %966 = vmatpush1.msra.mxu0 %v946
    %967 = vmatprep.subr.mxu0 0.0
    %968 = vmatpush1.msra.mxu0 %v947
    %969 = vmatprep.subr.mxu0 0.0
    %970 = vmatpush1.msra.mxu0 %v948
    %971 = vmatprep.subr.mxu0 0.0
    %972 = vmatpush1.msra.mxu0 %v949
    %973 = vmatprep.subr.mxu0 0.0
    %974 = vmatpush1.msra.mxu0 %v950
    %975 = vmatprep.subr.mxu0 0.0
    %976 = vmatpush1.msra.mxu0 %v951
    %977 = vmatprep.subr.mxu0 0.0
    %978 = vmatpush1.msra.mxu0 %v952
    %979 = vmatprep.subr.mxu0 0.0
    %980 = vmatpush1.msra.mxu0 %v953
    %981 = vmatprep.subr.mxu0 0.0
    %982 = vmatpush1.msra.mxu0 0.0
    %983 = vmatprep.subr.mxu0 0.0
    %984 = vmatpush1.msra.mxu0 0.0
    %985 = vmatprep.subr.mxu0 0.0
    %986 = vmatpush1.msra.mxu0 0.0
    %987 = vmatprep.subr.mxu0 0.0
    %988 = vmatpush1.msra.mxu0 0.0
    %989 = vmatprep.subr.mxu0 0.0
    %990 = vmatpush1.msra.mxu0 0.0
    %991 = vmatprep.subr.mxu0 0.0
    %992 = vmatpush1.msra.mxu0 0.0
    %993 = vmatprep.subr.mxu0 0.0
    %994 = vmatpush1.msra.mxu0 0.0
    %995 = vmatprep.subr.mxu0 0.0
    %996 = vmatpush1.msra.mxu0 0.0
    %997 = vmatprep.subr.mxu0 0.0
    %998 = vmatpush1.msra.mxu0 0.0
    %999 = vmatprep.subr.mxu0 0.0
    %1000 = vmatpush1.msra.mxu0 0.0
    %1001 = vmatprep.subr.mxu0 0.0
    %1002 = vmatpush1.msra.mxu0 0.0
    %1003 = vmatprep.subr.mxu0 0.0
    %1004 = vmatpush1.msra.mxu0 0.0
    %1005 = vmatprep.subr.mxu0 0.0
    %1006 = vmatpush1.msra.mxu0 0.0
    %1007 = vmatprep.subr.mxu0 0.0
    %1008 = vmatpush1.msra.mxu0 0.0
    %1009 = vmatprep.subr.mxu0 0.0
    %1010 = vmatpush1.msra.mxu0 0.0
    %1011 = vmatprep.subr.mxu0 0.0
    %1012 = vmatpush1.msra.mxu0 0.0
    %1013 = vmatprep.subr.mxu0 0.0
    %1014 = vmatpush1.msra.mxu0 0.0
    %1015 = vmatprep.subr.mxu0 0.0
    %1016 = vmatpush1.msra.mxu0 0.0
    %1017 = vmatprep.subr.mxu0 0.0
    %1018 = vmatpush1.msra.mxu0 0.0
    %1019 = vmatprep.subr.mxu0 0.0
    %1020 = vmatpush1.msra.mxu0 0.0
    %1021 = vmatprep.subr.mxu0 0.0
    %1022 = vmatpush1.msra.mxu0 0.0
    %1023 = vmatprep.subr.mxu0 0.0
    %1024 = vmatpush1.msra.mxu0 0.0
    %1025 = vmatprep.subr.mxu0 0.0
    %1026 = vmatpush1.msra.mxu0 0.0
    %1027 = vmatprep.subr.mxu0 0.0
    %1028 = vmatpush1.msra.mxu0 0.0
    %1029 = vmatprep.mubr.f32.mxu0 0.0
    %1030 = vmatmul.mubr.f32.gmra.mrb[0].mxu0 %v960
    %v1031 = vpop.f32.mrb[0].mxu0
    %v1032 = vadd.f32 %v958, %v1031
    %v1033 = vpop.f32.mrb[0].mxu0
    %1034 = vmatprep.mubr.f32.mxu0 0.0
    %1035 = vmatmul.mubr.f32.gmra.mrb[0].mxu0 %v963
    %v1036 = vpop.f32.mrb[0].mxu0
    %v1037 = vadd.f32 %v958, %v1036
    %v1038 = vpop.f32.mrb[0].mxu0
    %1039 = vdwg.mxu0
    %v1040 = vadd.f32 %v852, %v1032
    %v1041 = vadd.f32 %v853, %v1037
    %v1042 = vld [vmem:[#allocation4 + $0x140] sm:$0x1]
    %v1043 = vld [vmem:[#allocation4 + $0x148] sm:$0x1]
    %v1044 = vsel %vm131, %v1040, 0.0
    %1045 = vadd.xlane.f32.xlu0 %v1044
    %v1046 = vpop.xlane.xlu0 %1045
    %v1047 = vsel %vm131, %v1041, 0.0
    %1048 = vadd.xlane.f32.xlu0 %v1047
    %v1049 = vpop.xlane.xlu0 %1048
    %v1050 = vmul.f32 %v1046, %v138
    %v1051 = vmul.f32 %v1049, %v138
    %v1052 = vsub.f32 %v1040, %v1050
    %v1053 = vsub.f32 %v1041, %v1051
    %v1054 = vmul.f32 %v1052, %v1052
    %v1055 = vmul.f32 %v1053, %v1053
    %v1056 = vsel %vm131, %v1054, 0.0
    %1057 = vadd.xlane.f32.xlu0 %v1056
    %v1058 = vpop.xlane.xlu0 %1057
    %v1059 = vsel %vm131, %v1055, 0.0
    %1060 = vadd.xlane.f32.xlu0 %v1059
    %v1061 = vpop.xlane.xlu0 %1060
    %v1062 = vmul.f32 %v1058, %v138
    %v1063 = vmul.f32 %v1061, %v138
    %v1064 = vadd.f32 %v1062, 1e-05
    %v1065 = vadd.f32 %v1063, 1e-05
    %v1066 = vrsqrt.pop %v1064
    %v1067 = vrsqrt.pop %v1065
    %v1068 = vmul.f32 %v1052, %v1066
    %v1069 = vmul.f32 %v1053, %v1067
    %v1070 = vlaneseq
    %v1071 = vshrl.u32 %v1070, 7
    %v1072 = vsub.s32 0, %v1071
    %v1073 = vrot.slane %v1042, %v1072
    %v1074 = vmul.f32 %v1068, %v1073
    %v1075 = vmul.f32 %v1069, %v1073
    %v1076 = vlaneseq
    %v1077 = vshrl.u32 %v1076, 7
    %v1078 = vsub.s32 0, %v1077
    %v1079 = vrot.slane %v1043, %v1078
    %v1080 = vadd.f32 %v1074, %v1079
    %v1081 = vadd.f32 %v1075, %v1079
    %v1082 = vld [vmem:[#allocation4 + $0x150] sm:$0xff]
    %v1083 = vld [vmem:[#allocation4 + $0x158] sm:$0xff]
    %v1084 = vld [vmem:[#allocation4 + $0x160] sm:$0xff]
    %v1085 = vld [vmem:[#allocation4 + $0x168] sm:$0xff]
    %v1086 = vld [vmem:[#allocation4 + $0x170] sm:$0x1]
    %v1087 = vlaneseq
    %v1088 = vshrl.u32 %v1087, 7
    %v1089 = vsub.s32 0, %v1088
    %v1090 = vrot.slane %v1086, %v1089
    %v1092 = vsel %vm131, %v1080, 0
    %v1095 = vsel %vm131, %v1081, 0
    %1097 = vmatprep.subr.mxu0 0.0
    %1098 = vmatpush1.msra.mxu0 %v1082
    %1099 = vmatprep.subr.mxu0 0.0
    %1100 = vmatpush1.msra.mxu0 %v1083
    %1101 = vmatprep.subr.mxu0 0.0
    %1102 = vmatpush1.msra.mxu0 %v1084
    %1103 = vmatprep.subr.mxu0 0.0
    %1104 = vmatpush1.msra.mxu0 %v1085
    %1105 = vmatprep.subr.mxu0 0.0
    %1106 = vmatpush1.msra.mxu0 0.0
    %1107 = vmatprep.subr.mxu0 0.0
    %1108 = vmatpush1.msra.mxu0 0.0
    %1109 = vmatprep.subr.mxu0 0.0
    %1110 = vmatpush1.msra.mxu0 0.0
    %1111 = vmatprep.subr.mxu0 0.0
    %1112 = vmatpush1.msra.mxu0 0.0
    %1113 = vmatprep.subr.mxu0 0.0
    %1114 = vmatpush1.msra.mxu0 0.0
    %1115 = vmatprep.subr.mxu0 0.0
    %1116 = vmatpush1.msra.mxu0 0.0
    %1117 = vmatprep.subr.mxu0 0.0
    %1118 = vmatpush1.msra.mxu0 0.0
    %1119 = vmatprep.subr.mxu0 0.0
    %1120 = vmatpush1.msra.mxu0 0.0
    %1121 = vmatprep.subr.mxu0 0.0
    %1122 = vmatpush1.msra.mxu0 0.0
    %1123 = vmatprep.subr.mxu0 0.0
    %1124 = vmatpush1.msra.mxu0 0.0
    %1125 = vmatprep.subr.mxu0 0.0
    %1126 = vmatpush1.msra.mxu0 0.0
    %1127 = vmatprep.subr.mxu0 0.0
    %1128 = vmatpush1.msra.mxu0 0.0
    %1129 = vmatprep.subr.mxu0 0.0
    %1130 = vmatpush1.msra.mxu0 0.0
    %1131 = vmatprep.subr.mxu0 0.0
    %1132 = vmatpush1.msra.mxu0 0.0
    %1133 = vmatprep.subr.mxu0 0.0
    %1134 = vmatpush1.msra.mxu0 0.0
    %1135 = vmatprep.subr.mxu0 0.0
    %1136 = vmatpush1.msra.mxu0 0.0
    %1137 = vmatprep.subr.mxu0 0.0
    %1138 = vmatpush1.msra.mxu0 0.0
    %1139 = vmatprep.subr.mxu0 0.0
    %1140 = vmatpush1.msra.mxu0 0.0
    %1141 = vmatprep.subr.mxu0 0.0
    %1142 = vmatpush1.msra.mxu0 0.0
    %1143 = vmatprep.subr.mxu0 0.0
    %1144 = vmatpush1.msra.mxu0 0.0
    %1145 = vmatprep.subr.mxu0 0.0
    %1146 = vmatpush1.msra.mxu0 0.0
    %1147 = vmatprep.subr.mxu0 0.0
    %1148 = vmatpush1.msra.mxu0 0.0
    %1149 = vmatprep.subr.mxu0 0.0
    %1150 = vmatpush1.msra.mxu0 0.0
    %1151 = vmatprep.subr.mxu0 0.0
    %1152 = vmatpush1.msra.mxu0 0.0
    %1153 = vmatprep.subr.mxu0 0.0
    %1154 = vmatpush1.msra.mxu0 0.0
    %1155 = vmatprep.subr.mxu0 0.0
    %1156 = vmatpush1.msra.mxu0 0.0
    %1157 = vmatprep.subr.mxu0 0.0
    %1158 = vmatpush1.msra.mxu0 0.0
    %1159 = vmatprep.subr.mxu0 0.0
    %1160 = vmatpush1.msra.mxu0 0.0
    %1161 = vmatprep.mubr.f32.mxu0 0.0
    %1162 = vmatmul.mubr.f32.gmra.mrb[0].mxu0 %v1092
    %v1163 = vpop.f32.mrb[0].mxu0
    %v1164 = vadd.f32 %v1090, %v1163
    %v1165 = vpop.f32.mrb[0].mxu0
    %1166 = vmatprep.mubr.f32.mxu0 0.0
    %1167 = vmatmul.mubr.f32.gmra.mrb[0].mxu0 %v1095
    %v1168 = vpop.f32.mrb[0].mxu0
    %v1169 = vadd.f32 %v1090, %v1168
    %v1170 = vpop.f32.mrb[0].mxu0
    %1171 = vdwg.mxu0
    %1174 = vrot.lane.b32.xlu0 %v1164, 96
    %v1175 = vpop.permute.xlu0 %1174
    %1176 = vrot.lane.b32.xlu0 %v1169, 96
    %v1177 = vpop.permute.xlu0 %1176
    %1178 = vrot.lane.b32.xlu0 %v1164, 64
    %v1179 = vpop.permute.xlu0 %1178
    %1180 = vrot.lane.b32.xlu0 %v1169, 64
    %v1181 = vpop.permute.xlu0 %1180
    %1182 = vrot.lane.b32.xlu0 %v1164, 32
    %v1183 = vpop.permute.xlu0 %1182
    %1184 = vrot.lane.b32.xlu0 %v1169, 32
    %v1185 = vpop.permute.xlu0 %1184
    %1186 = vrot.lane.b32.xlu0 %v1164, 120
    %v1187 = vpop.permute.xlu0 %1186
    %1188 = vrot.lane.b32.xlu0 %v1169, 120
    %v1189 = vpop.permute.xlu0 %1188
    %1190 = vrot.lane.b32.xlu0 %v1175, 120
    %v1191 = vpop.permute.xlu0 %1190
    %1192 = vrot.lane.b32.xlu0 %v1177, 120
    %v1193 = vpop.permute.xlu0 %1192
    %1194 = vrot.lane.b32.xlu0 %v1179, 120
    %v1195 = vpop.permute.xlu0 %1194
    %1196 = vrot.lane.b32.xlu0 %v1181, 120
    %v1197 = vpop.permute.xlu0 %1196
    %1198 = vrot.lane.b32.xlu0 %v1183, 120
    %v1199 = vpop.permute.xlu0 %1198
    %1200 = vrot.lane.b32.xlu0 %v1185, 120
    %v1201 = vpop.permute.xlu0 %1200
    %v1202 = vsel %vm47, %v1164, 0
    %v1204 = vsel %vm47, %v1169, 0
    %v1206 = vsel %vm47, %v1175, 0
    %v1208 = vsel %vm47, %v1177, 0
    %v1210 = vsel %vm47, %v1179, 0
    %v1212 = vsel %vm47, %v1181, 0
    %v1214 = vsel %vm47, %v1183, 0
    %v1216 = vsel %vm47, %v1185, 0
    %v1218 = vsel %vm47, %v1187, 0
    %v1220 = vsel %vm47, %v1189, 0
    %v1222 = vsel %vm47, %v1191, 0
    %v1224 = vsel %vm47, %v1193, 0
    %v1226 = vsel %vm47, %v1195, 0
    %v1228 = vsel %vm47, %v1197, 0
    %v1230 = vsel %vm47, %v1199, 0
    %v1232 = vsel %vm47, %v1201, 0
    %1234 = vmatprep.subr.mxu0 0.0
    %1235 = vmatpush1.xpose.msra.mxu0 %v1218
    %1236 = vmatprep.subr.mxu0 0.0
    %1237 = vmatpush1.xpose.msra.mxu0 %v1220
    %1238 = vmatprep.subr.mxu0 0.0
    %1239 = vmatpush1.xpose.msra.mxu0 %v1222
    %1240 = vmatprep.subr.mxu0 0.0
    %1241 = vmatpush1.xpose.msra.mxu0 %v1224
    %1242 = vmatprep.subr.mxu0 0.0
    %1243 = vmatpush1.xpose.msra.mxu0 %v1226
    %1244 = vmatprep.subr.mxu0 0.0
    %1245 = vmatpush1.xpose.msra.mxu0 %v1228
    %1246 = vmatprep.subr.mxu0 0.0
    %1247 = vmatpush1.xpose.msra.mxu0 %v1230
    %1248 = vmatprep.subr.mxu0 0.0
    %1249 = vmatpush1.xpose.msra.mxu0 %v1232
    %1250 = vmatprep.subr.mxu0 0.0
    %1251 = vmatpush1.xpose.msra.mxu0 0.0
    %1252 = vmatprep.subr.mxu0 0.0
    %1253 = vmatpush1.xpose.msra.mxu0 0.0
    %1254 = vmatprep.subr.mxu0 0.0
    %1255 = vmatpush1.xpose.msra.mxu0 0.0
    %1256 = vmatprep.subr.mxu0 0.0
    %1257 = vmatpush1.xpose.msra.mxu0 0.0
    %1258 = vmatprep.subr.mxu0 0.0
    %1259 = vmatpush1.xpose.msra.mxu0 0.0
    %1260 = vmatprep.subr.mxu0 0.0
    %1261 = vmatpush1.xpose.msra.mxu0 0.0
    %1262 = vmatprep.subr.mxu0 0.0
    %1263 = vmatpush1.xpose.msra.mxu0 0.0
    %1264 = vmatprep.subr.mxu0 0.0
    %1265 = vmatpush1.xpose.msra.mxu0 0.0
    %1266 = vmatprep.subr.mxu0 0.0
    %1267 = vmatpush1.xpose.msra.mxu0 0.0
    %1268 = vmatprep.subr.mxu0 0.0
    %1269 = vmatpush1.xpose.msra.mxu0 0.0
    %1270 = vmatprep.subr.mxu0 0.0
    %1271 = vmatpush1.xpose.msra.mxu0 0.0
    %1272 = vmatprep.subr.mxu0 0.0
    %1273 = vmatpush1.xpose.msra.mxu0 0.0
    %1274 = vmatprep.subr.mxu0 0.0
    %1275 = vmatpush1.xpose.msra.mxu0 0.0
    %1276 = vmatprep.subr.mxu0 0.0
    %1277 = vmatpush1.xpose.msra.mxu0 0.0
    %1278 = vmatprep.subr.mxu0 0.0
    %1279 = vmatpush1.xpose.msra.mxu0 0.0
    %1280 = vmatprep.subr.mxu0 0.0
    %1281 = vmatpush1.xpose.msra.mxu0 0.0
    %1282 = vmatprep.subr.mxu0 0.0
    %1283 = vmatpush1.xpose.msra.mxu0 0.0
    %1284 = vmatprep.subr.mxu0 0.0
    %1285 = vmatpush1.xpose.msra.mxu0 0.0
    %1286 = vmatprep.subr.mxu0 0.0
    %1287 = vmatpush1.xpose.msra.mxu0 0.0
    %1288 = vmatprep.subr.mxu0 0.0
    %1289 = vmatpush1.xpose.msra.mxu0 0.0
    %1290 = vmatprep.subr.mxu0 0.0
    %1291 = vmatpush1.xpose.msra.mxu0 0.0
    %1292 = vmatprep.subr.mxu0 0.0
    %1293 = vmatpush1.xpose.msra.mxu0 0.0
    %1294 = vmatprep.subr.mxu0 0.0
    %1295 = vmatpush1.xpose.msra.mxu0 0.0
    %1296 = vmatprep.subr.mxu0 0.0
    %1297 = vmatpush1.xpose.msra.mxu0 0.0
    %1298 = vmatprep.mubr.f32.mxu0 0.0
    %1299 = vmatmul.mubr.f32.gmra.mrb[0].mxu0 %v1202
    %v1300 = vpop.f32.mrb[0].mxu0
    %v1301 = vadd.f32 %v175, %v1300
    %v1302 = vpop.f32.mrb[0].mxu0
    %1303 = vmatprep.mubr.f32.mxu0 0.0
    %1304 = vmatmul.mubr.f32.gmra.mrb[0].mxu0 %v1204
    %v1305 = vpop.f32.mrb[0].mxu0
    %v1306 = vadd.f32 %v176, %v1305
    %v1307 = vpop.f32.mrb[0].mxu0
    %1308 = vmatprep.mubr.f32.mxu0 0.0
    %1309 = vmatmul.mubr.f32.gmra.mrb[0].mxu0 %v1206
    %v1310 = vpop.f32.mrb[0].mxu0
    %v1311 = vadd.f32 %v177, %v1310
    %v1312 = vpop.f32.mrb[0].mxu0
    %1313 = vmatprep.mubr.f32.mxu0 0.0
    %1314 = vmatmul.mubr.f32.gmra.mrb[0].mxu0 %v1208
    %v1315 = vpop.f32.mrb[0].mxu0
    %v1316 = vadd.f32 %v178, %v1315
    %v1317 = vpop.f32.mrb[0].mxu0
    %1318 = vmatprep.mubr.f32.mxu0 0.0
    %1319 = vmatmul.mubr.f32.gmra.mrb[0].mxu0 %v1210
    %v1320 = vpop.f32.mrb[0].mxu0
    %v1321 = vadd.f32 %v179, %v1320
    %v1322 = vpop.f32.mrb[0].mxu0
    %1323 = vmatprep.mubr.f32.mxu0 0.0
    %1324 = vmatmul.mubr.f32.gmra.mrb[0].mxu0 %v1212
    %v1325 = vpop.f32.mrb[0].mxu0
    %v1326 = vadd.f32 %v180, %v1325
    %v1327 = vpop.f32.mrb[0].mxu0
    %1328 = vmatprep.mubr.f32.mxu0 0.0
    %1329 = vmatmul.mubr.f32.gmra.mrb[0].mxu0 %v1214
    %v1330 = vpop.f32.mrb[0].mxu0
    %v1331 = vadd.f32 %v181, %v1330
    %v1332 = vpop.f32.mrb[0].mxu0
    %1333 = vmatprep.mubr.f32.mxu0 0.0
    %1334 = vmatmul.mubr.f32.gmra.mrb[0].mxu0 %v1216
    %v1335 = vpop.f32.mrb[0].mxu0
    %v1336 = vadd.f32 %v182, %v1335
    %v1337 = vpop.f32.mrb[0].mxu0
    %1338 = vdwg.mxu0
    %v1339 = vsel %vm440, %v1301, -inf
    %1340 = vmax.xlane.f32.xlu0 %v1339
    %v1341 = vpop.xlane.xlu0 %1340
    %v1342 = vsel %vm440, %v1306, -inf
    %1343 = vmax.xlane.f32.xlu0 %v1342
    %v1344 = vpop.xlane.xlu0 %1343
    %v1345 = vsel %vm440, %v1311, -inf
    %1346 = vmax.xlane.f32.xlu0 %v1345
    %v1347 = vpop.xlane.xlu0 %1346
    %v1348 = vsel %vm440, %v1316, -inf
    %1349 = vmax.xlane.f32.xlu0 %v1348
    %v1350 = vpop.xlane.xlu0 %1349
    %v1351 = vsel %vm440, %v1321, -inf
    %1352 = vmax.xlane.f32.xlu0 %v1351
    %v1353 = vpop.xlane.xlu0 %1352
    %v1354 = vsel %vm440, %v1326, -inf
    %1355 = vmax.xlane.f32.xlu0 %v1354
    %v1356 = vpop.xlane.xlu0 %1355
    %v1357 = vsel %vm440, %v1331, -inf
    %1358 = vmax.xlane.f32.xlu0 %v1357
    %v1359 = vpop.xlane.xlu0 %1358
    %v1360 = vsel %vm440, %v1336, -inf
    %1361 = vmax.xlane.f32.xlu0 %v1360
    %v1362 = vpop.xlane.xlu0 %1361
    %v1363 = vsub.f32 %v1301, %v1341
    %v1364 = vsub.f32 %v1306, %v1344
    %v1365 = vsub.f32 %v1311, %v1347
    %v1366 = vsub.f32 %v1316, %v1350
    %v1367 = vsub.f32 %v1321, %v1353
    %v1368 = vsub.f32 %v1326, %v1356
    %v1369 = vsub.f32 %v1331, %v1359
    %v1370 = vsub.f32 %v1336, %v1362
    %v1371 = vmul.f32 %v1363, 1.442695
    %v1372 = vpow.pop %v1371
    %v1373 = vmul.f32 %v1364, 1.442695
    %v1374 = vpow.pop %v1373
    %v1375 = vmul.f32 %v1365, 1.442695
    %v1376 = vpow.pop %v1375
    %v1377 = vmul.f32 %v1366, 1.442695
    %v1378 = vpow.pop %v1377
    %v1379 = vmul.f32 %v1367, 1.442695
    %v1380 = vpow.pop %v1379
    %v1381 = vmul.f32 %v1368, 1.442695
    %v1382 = vpow.pop %v1381
    %v1383 = vmul.f32 %v1369, 1.442695
    %v1384 = vpow.pop %v1383
    %v1385 = vmul.f32 %v1370, 1.442695
    %v1386 = vpow.pop %v1385
    %v1387 = vsel %vm440, %v1372, 0.0
    %1388 = vadd.xlane.f32.xlu0 %v1387
    %v1389 = vpop.xlane.xlu0 %1388
    %v1390 = vsel %vm440, %v1374, 0.0
    %1391 = vadd.xlane.f32.xlu0 %v1390
    %v1392 = vpop.xlane.xlu0 %1391
    %v1393 = vsel %vm440, %v1376, 0.0
    %1394 = vadd.xlane.f32.xlu0 %v1393
    %v1395 = vpop.xlane.xlu0 %1394
    %v1396 = vsel %vm440, %v1378, 0.0
    %1397 = vadd.xlane.f32.xlu0 %v1396
    %v1398 = vpop.xlane.xlu0 %1397
    %v1399 = vsel %vm440, %v1380, 0.0
    %1400 = vadd.xlane.f32.xlu0 %v1399
    %v1401 = vpop.xlane.xlu0 %1400
    %v1402 = vsel %vm440, %v1382, 0.0
    %1403 = vadd.xlane.f32.xlu0 %v1402
    %v1404 = vpop.xlane.xlu0 %1403
    %v1405 = vsel %vm440, %v1384, 0.0
    %1406 = vadd.xlane.f32.xlu0 %v1405
    %v1407 = vpop.xlane.xlu0 %1406
    %v1408 = vsel %vm440, %v1386, 0.0
    %1409 = vadd.xlane.f32.xlu0 %v1408
    %v1410 = vpop.xlane.xlu0 %1409
    %v1411 = vrcp.pop %v1389
    %v1412 = vmul.f32 1.0, %v1411
    %v1413 = vrcp.pop %v1392
    %v1414 = vmul.f32 1.0, %v1413
    %v1415 = vrcp.pop %v1395
    %v1416 = vmul.f32 1.0, %v1415
    %v1417 = vrcp.pop %v1398
    %v1418 = vmul.f32 1.0, %v1417
    %v1419 = vrcp.pop %v1401
    %v1420 = vmul.f32 1.0, %v1419
    %v1421 = vrcp.pop %v1404
    %v1422 = vmul.f32 1.0, %v1421
    %v1423 = vrcp.pop %v1407
    %v1424 = vmul.f32 1.0, %v1423
    %v1425 = vrcp.pop %v1410
    %v1426 = vmul.f32 1.0, %v1425
    %v1427 = vmul.f32 %v1372, %v1412
    %v1428 = vmul.f32 %v1374, %v1414
    %v1429 = vmul.f32 %v1376, %v1416
    %v1430 = vmul.f32 %v1378, %v1418
    %v1431 = vmul.f32 %v1380, %v1420
    %v1432 = vmul.f32 %v1382, %v1422
    %v1433 = vmul.f32 %v1384, %v1424
    %v1434 = vmul.f32 %v1386, %v1426
    %1435 = vrot.lane.b32.xlu0 %v1164, 112
    %v1436 = vpop.permute.xlu0 %1435
    %1437 = vrot.lane.b32.xlu0 %v1169, 112
    %v1438 = vpop.permute.xlu0 %1437
    %1439 = vrot.lane.b32.xlu0 %v1175, 112
    %v1440 = vpop.permute.xlu0 %1439
    %1441 = vrot.lane.b32.xlu0 %v1177, 112
    %v1442 = vpop.permute.xlu0 %1441
    %1443 = vrot.lane.b32.xlu0 %v1179, 112
    %v1444 = vpop.permute.xlu0 %1443
    %1445 = vrot.lane.b32.xlu0 %v1181, 112
    %v1446 = vpop.permute.xlu0 %1445
    %1447 = vrot.lane.b32.xlu0 %v1183, 112
    %v1448 = vpop.permute.xlu0 %1447
    %1449 = vrot.lane.b32.xlu0 %v1185, 112
    %v1450 = vpop.permute.xlu0 %1449
    %v1460 = vsel %vm440, %v1427, 0
    %v1463 = vsel %vm440, %v1428, 0
    %v1466 = vsel %vm440, %v1429, 0
    %v1469 = vsel %vm440, %v1430, 0
    %v1472 = vsel %vm440, %v1431, 0
    %v1475 = vsel %vm440, %v1432, 0
    %v1478 = vsel %vm440, %v1433, 0
    %v1481 = vsel %vm440, %v1434, 0
    %1483 = vmatprep.subr.mxu0 0.0
    %1484 = vmatpush1.msra.mxu0 %v1436
    %1485 = vmatprep.subr.mxu0 0.0
    %1486 = vmatpush1.msra.mxu0 %v1438
    %1487 = vmatprep.subr.mxu0 0.0
    %1488 = vmatpush1.msra.mxu0 %v1440
    %1489 = vmatprep.subr.mxu0 0.0
    %1490 = vmatpush1.msra.mxu0 %v1442
    %1491 = vmatprep.subr.mxu0 0.0
    %1492 = vmatpush1.msra.mxu0 %v1444
    %1493 = vmatprep.subr.mxu0 0.0
    %1494 = vmatpush1.msra.mxu0 %v1446
    %1495 = vmatprep.subr.mxu0 0.0
    %1496 = vmatpush1.msra.mxu0 %v1448
    %1497 = vmatprep.subr.mxu0 0.0
    %1498 = vmatpush1.msra.mxu0 %v1450
    %1499 = vmatprep.subr.mxu0 0.0
    %1500 = vmatpush1.msra.mxu0 0.0
    %1501 = vmatprep.subr.mxu0 0.0
    %1502 = vmatpush1.msra.mxu0 0.0
    %1503 = vmatprep.subr.mxu0 0.0
    %1504 = vmatpush1.msra.mxu0 0.0
    %1505 = vmatprep.subr.mxu0 0.0
    %1506 = vmatpush1.msra.mxu0 0.0
    %1507 = vmatprep.subr.mxu0 0.0
    %1508 = vmatpush1.msra.mxu0 0.0
    %1509 = vmatprep.subr.mxu0 0.0
    %1510 = vmatpush1.msra.mxu0 0.0
    %1511 = vmatprep.subr.mxu0 0.0
    %1512 = vmatpush1.msra.mxu0 0.0
    %1513 = vmatprep.subr.mxu0 0.0
    %1514 = vmatpush1.msra.mxu0 0.0
    %1515 = vmatprep.subr.mxu0 0.0
    %1516 = vmatpush1.msra.mxu0 0.0
    %1517 = vmatprep.subr.mxu0 0.0
    %1518 = vmatpush1.msra.mxu0 0.0
    %1519 = vmatprep.subr.mxu0 0.0
    %1520 = vmatpush1.msra.mxu0 0.0
    %1521 = vmatprep.subr.mxu0 0.0
    %1522 = vmatpush1.msra.mxu0 0.0
    %1523 = vmatprep.subr.mxu0 0.0
    %1524 = vmatpush1.msra.mxu0 0.0
    %1525 = vmatprep.subr.mxu0 0.0
    %1526 = vmatpush1.msra.mxu0 0.0
    %1527 = vmatprep.subr.mxu0 0.0
    %1528 = vmatpush1.msra.mxu0 0.0
    %1529 = vmatprep.subr.mxu0 0.0
    %1530 = vmatpush1.msra.mxu0 0.0
    %1531 = vmatprep.subr.mxu0 0.0
    %1532 = vmatpush1.msra.mxu0 0.0
    %1533 = vmatprep.subr.mxu0 0.0
    %1534 = vmatpush1.msra.mxu0 0.0
    %1535 = vmatprep.subr.mxu0 0.0
    %1536 = vmatpush1.msra.mxu0 0.0
    %1537 = vmatprep.subr.mxu0 0.0
    %1538 = vmatpush1.msra.mxu0 0.0
    %1539 = vmatprep.subr.mxu0 0.0
    %1540 = vmatpush1.msra.mxu0 0.0
    %1541 = vmatprep.subr.mxu0 0.0
    %1542 = vmatpush1.msra.mxu0 0.0
    %1543 = vmatprep.subr.mxu0 0.0
    %1544 = vmatpush1.msra.mxu0 0.0
    %1545 = vmatprep.subr.mxu0 0.0
    %1546 = vmatpush1.msra.mxu0 0.0
    %1547 = vmatprep.mubr.f32.mxu0 0.0
    %1548 = vmatmul.mubr.f32.gmra.mrb[0].mxu0 %v1460
    %v1549 = vpop.f32.mrb[0].mxu0
    %v1550 = vadd.f32 0.0, %v1549
    %v1551 = vpop.f32.mrb[0].mxu0
    %1552 = vmatprep.mubr.f32.mxu0 0.0
    %1553 = vmatmul.mubr.f32.gmra.mrb[0].mxu0 %v1463
    %v1554 = vpop.f32.mrb[0].mxu0
    %v1555 = vadd.f32 0.0, %v1554
    %v1556 = vpop.f32.mrb[0].mxu0
    %1557 = vmatprep.mubr.f32.mxu0 0.0
    %1558 = vmatmul.mubr.f32.gmra.mrb[0].mxu0 %v1466
    %v1559 = vpop.f32.mrb[0].mxu0
    %v1560 = vadd.f32 0.0, %v1559
    %v1561 = vpop.f32.mrb[0].mxu0
    %1562 = vmatprep.mubr.f32.mxu0 0.0
    %1563 = vmatmul.mubr.f32.gmra.mrb[0].mxu0 %v1469
    %v1564 = vpop.f32.mrb[0].mxu0
    %v1565 = vadd.f32 0.0, %v1564
    %v1566 = vpop.f32.mrb[0].mxu0
    %1567 = vmatprep.mubr.f32.mxu0 0.0
    %1568 = vmatmul.mubr.f32.gmra.mrb[0].mxu0 %v1472
    %v1569 = vpop.f32.mrb[0].mxu0
    %v1570 = vadd.f32 0.0, %v1569
    %v1571 = vpop.f32.mrb[0].mxu0
    %1572 = vmatprep.mubr.f32.mxu0 0.0
    %1573 = vmatmul.mubr.f32.gmra.mrb[0].mxu0 %v1475
    %v1574 = vpop.f32.mrb[0].mxu0
    %v1575 = vadd.f32 0.0, %v1574
    %v1576 = vpop.f32.mrb[0].mxu0
    %1577 = vmatprep.mubr.f32.mxu0 0.0
    %1578 = vmatmul.mubr.f32.gmra.mrb[0].mxu0 %v1478
    %v1579 = vpop.f32.mrb[0].mxu0
    %v1580 = vadd.f32 0.0, %v1579
    %v1581 = vpop.f32.mrb[0].mxu0
    %1582 = vmatprep.mubr.f32.mxu0 0.0
    %1583 = vmatmul.mubr.f32.gmra.mrb[0].mxu0 %v1481
    %v1584 = vpop.f32.mrb[0].mxu0
    %v1585 = vadd.f32 0.0, %v1584
    %v1586 = vpop.f32.mrb[0].mxu0
    %1587 = vdwg.mxu0
    %1590 = vrot.lane.b32.xlu0 %v1560, 8
    %v1591 = vpop.permute.xlu0 %1590
    %1592 = vrot.lane.b32.xlu0 %v1565, 8
    %v1593 = vpop.permute.xlu0 %1592
    %1598 = vrot.lane.b32.xlu0 %v1570, 16
    %v1599 = vpop.permute.xlu0 %1598
    %1600 = vrot.lane.b32.xlu0 %v1575, 16
    %v1601 = vpop.permute.xlu0 %1600
    %1606 = vrot.lane.b32.xlu0 %v1580, 24
    %v1607 = vpop.permute.xlu0 %1606
    %1608 = vrot.lane.b32.xlu0 %v1585, 24
    %v1609 = vpop.permute.xlu0 %1608
    %v1612 = vsel %vm47, %v1550, %v1591
    %v1613 = vsel %vm47, %v1555, %v1593
    %v1614 = vsel %vm716, %v1612, %v1599
    %v1615 = vsel %vm716, %v1613, %v1601
    %v1616 = vsel %vm719, %v1614, %v1607
    %v1617 = vsel %vm719, %v1615, %v1609
    %v1618 = vld [vmem:[#allocation4 + $0x178] sm:$0xff]
    %v1619 = vld [vmem:[#allocation4 + $0x180] sm:$0xff]
    %v1620 = vld [vmem:[#allocation4 + $0x188] sm:$0xff]
    %v1621 = vld [vmem:[#allocation4 + $0x190] sm:$0xff]
    %v1622 = vld [vmem:[#allocation4 + $0x198] sm:$0x1]
    %v1623 = vlaneseq
    %v1624 = vshrl.u32 %v1623, 7
    %v1625 = vsub.s32 0, %v1624
    %v1626 = vrot.slane %v1622, %v1625
    %v1628 = vsel %vm131, %v1616, 0
    %v1631 = vsel %vm131, %v1617, 0
    %1633 = vmatprep.subr.mxu0 0.0
    %1634 = vmatpush1.msra.mxu0 %v1618
    %1635 = vmatprep.subr.mxu0 0.0
    %1636 = vmatpush1.msra.mxu0 %v1619
    %1637 = vmatprep.subr.mxu0 0.0
    %1638 = vmatpush1.msra.mxu0 %v1620
    %1639 = vmatprep.subr.mxu0 0.0
    %1640 = vmatpush1.msra.mxu0 %v1621
    %1641 = vmatprep.subr.mxu0 0.0
    %1642 = vmatpush1.msra.mxu0 0.0
    %1643 = vmatprep.subr.mxu0 0.0
    %1644 = vmatpush1.msra.mxu0 0.0
    %1645 = vmatprep.subr.mxu0 0.0
    %1646 = vmatpush1.msra.mxu0 0.0
    %1647 = vmatprep.subr.mxu0 0.0
    %1648 = vmatpush1.msra.mxu0 0.0
    %1649 = vmatprep.subr.mxu0 0.0
    %1650 = vmatpush1.msra.mxu0 0.0
    %1651 = vmatprep.subr.mxu0 0.0
    %1652 = vmatpush1.msra.mxu0 0.0
    %1653 = vmatprep.subr.mxu0 0.0
    %1654 = vmatpush1.msra.mxu0 0.0
    %1655 = vmatprep.subr.mxu0 0.0
    %1656 = vmatpush1.msra.mxu0 0.0
    %1657 = vmatprep.subr.mxu0 0.0
    %1658 = vmatpush1.msra.mxu0 0.0
    %1659 = vmatprep.subr.mxu0 0.0
    %1660 = vmatpush1.msra.mxu0 0.0
    %1661 = vmatprep.subr.mxu0 0.0
    %1662 = vmatpush1.msra.mxu0 0.0
    %1663 = vmatprep.subr.mxu0 0.0
    %1664 = vmatpush1.msra.mxu0 0.0
    %1665 = vmatprep.subr.mxu0 0.0
    %1666 = vmatpush1.msra.mxu0 0.0
    %1667 = vmatprep.subr.mxu0 0.0
    %1668 = vmatpush1.msra.mxu0 0.0
    %1669 = vmatprep.subr.mxu0 0.0
    %1670 = vmatpush1.msra.mxu0 0.0
    %1671 = vmatprep.subr.mxu0 0.0
    %1672 = vmatpush1.msra.mxu0 0.0
    %1673 = vmatprep.subr.mxu0 0.0
    %1674 = vmatpush1.msra.mxu0 0.0
    %1675 = vmatprep.subr.mxu0 0.0
    %1676 = vmatpush1.msra.mxu0 0.0
    %1677 = vmatprep.subr.mxu0 0.0
    %1678 = vmatpush1.msra.mxu0 0.0
    %1679 = vmatprep.subr.mxu0 0.0
    %1680 = vmatpush1.msra.mxu0 0.0
    %1681 = vmatprep.subr.mxu0 0.0
    %1682 = vmatpush1.msra.mxu0 0.0
    %1683 = vmatprep.subr.mxu0 0.0
    %1684 = vmatpush1.msra.mxu0 0.0
    %1685 = vmatprep.subr.mxu0 0.0
    %1686 = vmatpush1.msra.mxu0 0.0
    %1687 = vmatprep.subr.mxu0 0.0
    %1688 = vmatpush1.msra.mxu0 0.0
    %1689 = vmatprep.subr.mxu0 0.0
    %1690 = vmatpush1.msra.mxu0 0.0
    %1691 = vmatprep.subr.mxu0 0.0
    %1692 = vmatpush1.msra.mxu0 0.0
    %1693 = vmatprep.subr.mxu0 0.0
    %1694 = vmatpush1.msra.mxu0 0.0
    %1695 = vmatprep.subr.mxu0 0.0
    %1696 = vmatpush1.msra.mxu0 0.0
    %1697 = vmatprep.mubr.f32.mxu0 0.0
    %1698 = vmatmul.mubr.f32.gmra.mrb[0].mxu0 %v1628
    %v1699 = vpop.f32.mrb[0].mxu0
    %v1700 = vadd.f32 %v1626, %v1699
    %v1701 = vpop.f32.mrb[0].mxu0
    %1702 = vmatprep.mubr.f32.mxu0 0.0
    %1703 = vmatmul.mubr.f32.gmra.mrb[0].mxu0 %v1631
    %v1704 = vpop.f32.mrb[0].mxu0
    %v1705 = vadd.f32 %v1626, %v1704
    %v1706 = vpop.f32.mrb[0].mxu0
    %1707 = vdwg.mxu0
    %v1708 = vadd.f32 %v1080, %v1700
    %v1709 = vadd.f32 %v1081, %v1705
    %v1710 = vld [vmem:[#allocation4 + $0x1a0] sm:$0x1]
    %v1711 = vld [vmem:[#allocation4 + $0x1a8] sm:$0x1]
    %v1712 = vsel %vm131, %v1708, 0.0
    %1713 = vadd.xlane.f32.xlu0 %v1712
    %v1714 = vpop.xlane.xlu0 %1713
    %v1715 = vsel %vm131, %v1709, 0.0
    %1716 = vadd.xlane.f32.xlu0 %v1715
    %v1717 = vpop.xlane.xlu0 %1716
    %v1718 = vmul.f32 %v1714, %v138
    %v1719 = vmul.f32 %v1717, %v138
    %v1720 = vsub.f32 %v1708, %v1718
    %v1721 = vsub.f32 %v1709, %v1719
    %v1722 = vmul.f32 %v1720, %v1720
    %v1723 = vmul.f32 %v1721, %v1721
    %v1724 = vsel %vm131, %v1722, 0.0
    %1725 = vadd.xlane.f32.xlu0 %v1724
    %v1726 = vpop.xlane.xlu0 %1725
    %v1727 = vsel %vm131, %v1723, 0.0
    %1728 = vadd.xlane.f32.xlu0 %v1727
    %v1729 = vpop.xlane.xlu0 %1728
    %v1730 = vmul.f32 %v1726, %v138
    %v1731 = vmul.f32 %v1729, %v138
    %v1732 = vadd.f32 %v1730, 1e-05
    %v1733 = vadd.f32 %v1731, 1e-05
    %v1734 = vrsqrt.pop %v1732
    %v1735 = vrsqrt.pop %v1733
    %v1736 = vmul.f32 %v1720, %v1734
    %v1737 = vmul.f32 %v1721, %v1735
    %v1738 = vlaneseq
    %v1739 = vshrl.u32 %v1738, 7
    %v1740 = vsub.s32 0, %v1739
    %v1741 = vrot.slane %v1710, %v1740
    %v1742 = vmul.f32 %v1736, %v1741
    %v1743 = vmul.f32 %v1737, %v1741
    %v1744 = vlaneseq
    %v1745 = vshrl.u32 %v1744, 7
    %v1746 = vsub.s32 0, %v1745
    %v1747 = vrot.slane %v1711, %v1746
    %v1748 = vadd.f32 %v1742, %v1747
    %v1749 = vadd.f32 %v1743, %v1747
    %v1750 = vld [vmem:[#allocation4 + $0x1b0] sm:$0xff]
    %v1751 = vld [vmem:[#allocation4 + $0x1b8] sm:$0xff]
    %v1752 = vld [vmem:[#allocation4 + $0x1c0] sm:$0xff]
    %v1753 = vld [vmem:[#allocation4 + $0x1c8] sm:$0xff]
    %v1754 = vld [vmem:[#allocation4 + $0x1d0] sm:$0x1]
    %v1755 = vlaneseq
    %v1756 = vshrl.u32 %v1755, 7
    %v1757 = vsub.s32 0, %v1756
    %v1758 = vrot.slane %v1754, %v1757
    %v1760 = vsel %vm131, %v1748, 0
    %v1763 = vsel %vm131, %v1749, 0
    %1765 = vmatprep.subr.mxu0 0.0
    %1766 = vmatpush1.msra.mxu0 %v1750
    %1767 = vmatprep.subr.mxu0 0.0
    %1768 = vmatpush1.msra.mxu0 %v1751
    %1769 = vmatprep.subr.mxu0 0.0
    %1770 = vmatpush1.msra.mxu0 %v1752
    %1771 = vmatprep.subr.mxu0 0.0
    %1772 = vmatpush1.msra.mxu0 %v1753
    %1773 = vmatprep.subr.mxu0 0.0
    %1774 = vmatpush1.msra.mxu0 0.0
    %1775 = vmatprep.subr.mxu0 0.0
    %1776 = vmatpush1.msra.mxu0 0.0
    %1777 = vmatprep.subr.mxu0 0.0
    %1778 = vmatpush1.msra.mxu0 0.0
    %1779 = vmatprep.subr.mxu0 0.0
    %1780 = vmatpush1.msra.mxu0 0.0
    %1781 = vmatprep.subr.mxu0 0.0
    %1782 = vmatpush1.msra.mxu0 0.0
    %1783 = vmatprep.subr.mxu0 0.0
    %1784 = vmatpush1.msra.mxu0 0.0
    %1785 = vmatprep.subr.mxu0 0.0
    %1786 = vmatpush1.msra.mxu0 0.0
    %1787 = vmatprep.subr.mxu0 0.0
    %1788 = vmatpush1.msra.mxu0 0.0
    %1789 = vmatprep.subr.mxu0 0.0
    %1790 = vmatpush1.msra.mxu0 0.0
    %1791 = vmatprep.subr.mxu0 0.0
    %1792 = vmatpush1.msra.mxu0 0.0
    %1793 = vmatprep.subr.mxu0 0.0
    %1794 = vmatpush1.msra.mxu0 0.0
    %1795 = vmatprep.subr.mxu0 0.0
    %1796 = vmatpush1.msra.mxu0 0.0
    %1797 = vmatprep.subr.mxu0 0.0
    %1798 = vmatpush1.msra.mxu0 0.0
    %1799 = vmatprep.subr.mxu0 0.0
    %1800 = vmatpush1.msra.mxu0 0.0
    %1801 = vmatprep.subr.mxu0 0.0
    %1802 = vmatpush1.msra.mxu0 0.0
    %1803 = vmatprep.subr.mxu0 0.0
    %1804 = vmatpush1.msra.mxu0 0.0
    %1805 = vmatprep.subr.mxu0 0.0
    %1806 = vmatpush1.msra.mxu0 0.0
    %1807 = vmatprep.subr.mxu0 0.0
    %1808 = vmatpush1.msra.mxu0 0.0
    %1809 = vmatprep.subr.mxu0 0.0
    %1810 = vmatpush1.msra.mxu0 0.0
    %1811 = vmatprep.subr.mxu0 0.0
    %1812 = vmatpush1.msra.mxu0 0.0
    %1813 = vmatprep.subr.mxu0 0.0
    %1814 = vmatpush1.msra.mxu0 0.0
    %1815 = vmatprep.subr.mxu0 0.0
    %1816 = vmatpush1.msra.mxu0 0.0
    %1817 = vmatprep.subr.mxu0 0.0
    %1818 = vmatpush1.msra.mxu0 0.0
    %1819 = vmatprep.subr.mxu0 0.0
    %1820 = vmatpush1.msra.mxu0 0.0
    %1821 = vmatprep.subr.mxu0 0.0
    %1822 = vmatpush1.msra.mxu0 0.0
    %1823 = vmatprep.subr.mxu0 0.0
    %1824 = vmatpush1.msra.mxu0 0.0
    %1825 = vmatprep.subr.mxu0 0.0
    %1826 = vmatpush1.msra.mxu0 0.0
    %1827 = vmatprep.subr.mxu0 0.0
    %1828 = vmatpush1.msra.mxu0 0.0
    %1829 = vmatprep.mubr.f32.mxu0 0.0
    %1830 = vmatmul.mubr.f32.gmra.mrb[0].mxu0 %v1760
    %v1831 = vpop.f32.mrb[0].mxu0
    %v1832 = vadd.f32 %v1758, %v1831
    %v1833 = vpop.f32.mrb[0].mxu0
    %1834 = vmatprep.mubr.f32.mxu0 0.0
    %1835 = vmatmul.mubr.f32.gmra.mrb[0].mxu0 %v1763
    %v1836 = vpop.f32.mrb[0].mxu0
    %v1837 = vadd.f32 %v1758, %v1836
    %v1838 = vpop.f32.mrb[0].mxu0
    %1839 = vdwg.mxu0
    %v1840 = vmax.f32 %v1832, 0.0
    %v1841 = vmax.f32 %v1837, 0.0
    %v1842 = vld [vmem:[#allocation4 + $0x1d8] sm:$0xff]
    %v1843 = vld [vmem:[#allocation4 + $0x1e0] sm:$0xff]
    %v1844 = vld [vmem:[#allocation4 + $0x1e8] sm:$0xff]
    %v1845 = vld [vmem:[#allocation4 + $0x1f0] sm:$0xff]
    %v1846 = vld [vmem:[#allocation4 + $0x1f8] sm:$0xff]
    %v1847 = vld [vmem:[#allocation4 + $0x200] sm:$0xff]
    %v1848 = vld [vmem:[#allocation4 + $0x208] sm:$0xff]
    %v1849 = vld [vmem:[#allocation4 + $0x210] sm:$0xff]
    %v1850 = vld [vmem:[#allocation4 + $0x218] sm:$0x1]
    %v1851 = vlaneseq
    %v1852 = vshrl.u32 %v1851, 7
    %v1853 = vsub.s32 0, %v1852
    %v1854 = vrot.slane %v1850, %v1853
    %v1856 = vsel %vm440, %v1840, 0
    %v1859 = vsel %vm440, %v1841, 0
    %1861 = vmatprep.subr.mxu0 0.0
    %1862 = vmatpush1.msra.mxu0 %v1842
    %1863 = vmatprep.subr.mxu0 0.0
    %1864 = vmatpush1.msra.mxu0 %v1843
    %1865 = vmatprep.subr.mxu0 0.0
    %1866 = vmatpush1.msra.mxu0 %v1844
    %1867 = vmatprep.subr.mxu0 0.0
    %1868 = vmatpush1.msra.mxu0 %v1845
    %1869 = vmatprep.subr.mxu0 0.0
    %1870 = vmatpush1.msra.mxu0 %v1846
    %1871 = vmatprep.subr.mxu0 0.0
    %1872 = vmatpush1.msra.mxu0 %v1847
    %1873 = vmatprep.subr.mxu0 0.0
    %1874 = vmatpush1.msra.mxu0 %v1848
    %1875 = vmatprep.subr.mxu0 0.0
    %1876 = vmatpush1.msra.mxu0 %v1849
    %1877 = vmatprep.subr.mxu0 0.0
    %1878 = vmatpush1.msra.mxu0 0.0
    %1879 = vmatprep.subr.mxu0 0.0
    %1880 = vmatpush1.msra.mxu0 0.0
    %1881 = vmatprep.subr.mxu0 0.0
    %1882 = vmatpush1.msra.mxu0 0.0
    %1883 = vmatprep.subr.mxu0 0.0
    %1884 = vmatpush1.msra.mxu0 0.0
    %1885 = vmatprep.subr.mxu0 0.0
    %1886 = vmatpush1.msra.mxu0 0.0
    %1887 = vmatprep.subr.mxu0 0.0
    %1888 = vmatpush1.msra.mxu0 0.0
    %1889 = vmatprep.subr.mxu0 0.0
    %1890 = vmatpush1.msra.mxu0 0.0
    %1891 = vmatprep.subr.mxu0 0.0
    %1892 = vmatpush1.msra.mxu0 0.0
    %1893 = vmatprep.subr.mxu0 0.0
    %1894 = vmatpush1.msra.mxu0 0.0
    %1895 = vmatprep.subr.mxu0 0.0
    %1896 = vmatpush1.msra.mxu0 0.0
    %1897 = vmatprep.subr.mxu0 0.0
    %1898 = vmatpush1.msra.mxu0 0.0
    %1899 = vmatprep.subr.mxu0 0.0
    %1900 = vmatpush1.msra.mxu0 0.0
    %1901 = vmatprep.subr.mxu0 0.0
    %1902 = vmatpush1.msra.mxu0 0.0
    %1903 = vmatprep.subr.mxu0 0.0
    %1904 = vmatpush1.msra.mxu0 0.0
    %1905 = vmatprep.subr.mxu0 0.0
    %1906 = vmatpush1.msra.mxu0 0.0
    %1907 = vmatprep.subr.mxu0 0.0
    %1908 = vmatpush1.msra.mxu0 0.0
    %1909 = vmatprep.subr.mxu0 0.0
    %1910 = vmatpush1.msra.mxu0 0.0
    %1911 = vmatprep.subr.mxu0 0.0
    %1912 = vmatpush1.msra.mxu0 0.0
    %1913 = vmatprep.subr.mxu0 0.0
    %1914 = vmatpush1.msra.mxu0 0.0
    %1915 = vmatprep.subr.mxu0 0.0
    %1916 = vmatpush1.msra.mxu0 0.0
    %1917 = vmatprep.subr.mxu0 0.0
    %1918 = vmatpush1.msra.mxu0 0.0
    %1919 = vmatprep.subr.mxu0 0.0
    %1920 = vmatpush1.msra.mxu0 0.0
    %1921 = vmatprep.subr.mxu0 0.0
    %1922 = vmatpush1.msra.mxu0 0.0
    %1923 = vmatprep.subr.mxu0 0.0
    %1924 = vmatpush1.msra.mxu0 0.0
    %1925 = vmatprep.mubr.f32.mxu0 0.0
    %1926 = vmatmul.mubr.f32.gmra.mrb[0].mxu0 %v1856
    %v1927 = vpop.f32.mrb[0].mxu0
    %v1928 = vadd.f32 %v1854, %v1927
    %v1929 = vpop.f32.mrb[0].mxu0
    %1930 = vmatprep.mubr.f32.mxu0 0.0
    %1931 = vmatmul.mubr.f32.gmra.mrb[0].mxu0 %v1859
    %v1932 = vpop.f32.mrb[0].mxu0
    %v1933 = vadd.f32 %v1854, %v1932
    %v1934 = vpop.f32.mrb[0].mxu0
    %1935 = vdwg.mxu0
    %v1936 = vadd.f32 %v1748, %v1928
    %v1937 = vadd.f32 %v1749, %v1933
    %v1938 = vld [vmem:[#allocation4 + $0x220] sm:$0x1]
    %v1939 = vld [vmem:[#allocation4 + $0x228] sm:$0x1]
    %v1940 = vsel %vm131, %v1936, 0.0
    %1941 = vadd.xlane.f32.xlu0 %v1940
    %v1942 = vpop.xlane.xlu0 %1941
    %v1943 = vsel %vm131, %v1937, 0.0
    %1944 = vadd.xlane.f32.xlu0 %v1943
    %v1945 = vpop.xlane.xlu0 %1944
    %v1946 = vmul.f32 %v1942, %v138
    %v1947 = vmul.f32 %v1945, %v138
    %v1948 = vsub.f32 %v1936, %v1946
    %v1949 = vsub.f32 %v1937, %v1947
    %v1950 = vmul.f32 %v1948, %v1948
    %v1951 = vmul.f32 %v1949, %v1949
    %v1952 = vsel %vm131, %v1950, 0.0
    %1953 = vadd.xlane.f32.xlu0 %v1952
    %v1954 = vpop.xlane.xlu0 %1953
    %v1955 = vsel %vm131, %v1951, 0.0
    %1956 = vadd.xlane.f32.xlu0 %v1955
    %v1957 = vpop.xlane.xlu0 %1956
    %v1958 = vmul.f32 %v1954, %v138
    %v1959 = vmul.f32 %v1957, %v138
    %v1960 = vadd.f32 %v1958, 1e-05
    %v1961 = vadd.f32 %v1959, 1e-05
    %v1962 = vrsqrt.pop %v1960
    %v1963 = vrsqrt.pop %v1961
    %v1964 = vmul.f32 %v1948, %v1962
    %v1965 = vmul.f32 %v1949, %v1963
    %v1966 = vlaneseq
    %v1967 = vshrl.u32 %v1966, 7
    %v1968 = vsub.s32 0, %v1967
    %v1969 = vrot.slane %v1938, %v1968
    %v1970 = vmul.f32 %v1964, %v1969
    %v1971 = vmul.f32 %v1965, %v1969
    %v1972 = vlaneseq
    %v1973 = vshrl.u32 %v1972, 7
    %v1974 = vsub.s32 0, %v1973
    %v1975 = vrot.slane %v1939, %v1974
    %v1976 = vadd.f32 %v1970, %v1975
    %v1977 = vadd.f32 %v1971, %v1975
    %v1979 = vrot.slane %v1976, 7
    %v1982 = vrot.slane %v1977, 6
    %vm1984 = vcmask 1040384
    %v1985 = vsel %vm1984, %v1979, %v1982
    %v1986 = vld [vmem:[#allocation4 + $0x230] sm:$0xff]
    %v1987 = vld [vmem:[#allocation4 + $0x238] sm:$0xff]
    %v1988 = vld [vmem:[#allocation4 + $0x240] sm:$0xff]
    %v1989 = vld [vmem:[#allocation4 + $0x248] sm:$0xff]
    %v1990 = vld [vmem:[#allocation4 + $0x250] sm:$0x1]
    %v1991 = vlaneseq
    %v1992 = vshrl.u32 %v1991, 7
    %v1993 = vsub.s32 0, %v1992
    %v1994 = vrot.slane %v1990, %v1993
    %v1996 = vsel %vm131, %v1985, 0
    %1998 = vmatprep.subr.mxu0 0.0
    %1999 = vmatpush1.msra.mxu0 %v1986
    %2000 = vmatprep.subr.mxu0 0.0
    %2001 = vmatpush1.msra.mxu0 %v1987
    %2002 = vmatprep.subr.mxu0 0.0
    %2003 = vmatpush1.msra.mxu0 %v1988
    %2004 = vmatprep.subr.mxu0 0.0
    %2005 = vmatpush1.msra.mxu0 %v1989
    %2006 = vmatprep.subr.mxu0 0.0
    %2007 = vmatpush1.msra.mxu0 0.0
    %2008 = vmatprep.subr.mxu0 0.0
    %2009 = vmatpush1.msra.mxu0 0.0
    %2010 = vmatprep.subr.mxu0 0.0
    %2011 = vmatpush1.msra.mxu0 0.0
    %2012 = vmatprep.subr.mxu0 0.0
    %2013 = vmatpush1.msra.mxu0 0.0
    %2014 = vmatprep.subr.mxu0 0.0
    %2015 = vmatpush1.msra.mxu0 0.0
    %2016 = vmatprep.subr.mxu0 0.0
    %2017 = vmatpush1.msra.mxu0 0.0
    %2018 = vmatprep.subr.mxu0 0.0
    %2019 = vmatpush1.msra.mxu0 0.0
    %2020 = vmatprep.subr.mxu0 0.0
    %2021 = vmatpush1.msra.mxu0 0.0
    %2022 = vmatprep.subr.mxu0 0.0
    %2023 = vmatpush1.msra.mxu0 0.0
    %2024 = vmatprep.subr.mxu0 0.0
    %2025 = vmatpush1.msra.mxu0 0.0
    %2026 = vmatprep.subr.mxu0 0.0
    %2027 = vmatpush1.msra.mxu0 0.0
    %2028 = vmatprep.subr.mxu0 0.0
    %2029 = vmatpush1.msra.mxu0 0.0
    %2030 = vmatprep.subr.mxu0 0.0
    %2031 = vmatpush1.msra.mxu0 0.0
    %2032 = vmatprep.subr.mxu0 0.0
    %2033 = vmatpush1.msra.mxu0 0.0
    %2034 = vmatprep.subr.mxu0 0.0
    %2035 = vmatpush1.msra.mxu0 0.0
    %2036 = vmatprep.subr.mxu0 0.0
    %2037 = vmatpush1.msra.mxu0 0.0
    %2038 = vmatprep.subr.mxu0 0.0
    %2039 = vmatpush1.msra.mxu0 0.0
    %2040 = vmatprep.subr.mxu0 0.0
    %2041 = vmatpush1.msra.mxu0 0.0
    %2042 = vmatprep.subr.mxu0 0.0
    %2043 = vmatpush1.msra.mxu0 0.0
    %2044 = vmatprep.subr.mxu0 0.0
    %2045 = vmatpush1.msra.mxu0 0.0
    %2046 = vmatprep.subr.mxu0 0.0
    %2047 = vmatpush1.msra.mxu0 0.0
    %2048 = vmatprep.subr.mxu0 0.0
    %2049 = vmatpush1.msra.mxu0 0.0
    %2050 = vmatprep.subr.mxu0 0.0
    %2051 = vmatpush1.msra.mxu0 0.0
    %2052 = vmatprep.subr.mxu0 0.0
    %2053 = vmatpush1.msra.mxu0 0.0
    %2054 = vmatprep.subr.mxu0 0.0
    %2055 = vmatpush1.msra.mxu0 0.0
    %2056 = vmatprep.subr.mxu0 0.0
    %2057 = vmatpush1.msra.mxu0 0.0
    %2058 = vmatprep.subr.mxu0 0.0
    %2059 = vmatpush1.msra.mxu0 0.0
    %2060 = vmatprep.subr.mxu0 0.0
    %2061 = vmatpush1.msra.mxu0 0.0
    %2062 = vmatprep.mubr.f32.mxu0 0.0
    %2063 = vmatmul.mubr.f32.gmra.mrb[0].mxu0 %v1996
    %v2064 = vpop.f32.mrb[0].mxu0
    %v2065 = vadd.f32 %v1994, %v2064
    %v2066 = vpop.f32.mrb[0].mxu0
    %2067 = vdwg.mxu0
    %v2068 = vmax.f32 %v2065, 0.0
    %v2069 = vld [vmem:[#allocation4 + $0x258] sm:$0xff]
    %v2070 = vld [vmem:[#allocation4 + $0x260] sm:$0xff]
    %v2071 = vld [vmem:[#allocation4 + $0x268] sm:$0xff]
    %v2072 = vld [vmem:[#allocation4 + $0x270] sm:$0xff]
    %v2073 = vld [vmem:[#allocation4 + $0x278] sm:$0xff]
    %v2074 = vld [vmem:[#allocation4 + $0x280] sm:$0xff]
    %v2075 = vld [vmem:[#allocation4 + $0x288] sm:$0xff]
    %v2076 = vld [vmem:[#allocation4 + $0x290] sm:$0xff]
    %v2077 = vld [vmem:[#allocation4 + $0x298] sm:$0x1]
    %v2078 = vlaneseq
    %v2079 = vshrl.u32 %v2078, 7
    %v2080 = vsub.s32 0, %v2079
    %v2081 = vrot.slane %v2077, %v2080
    %v2083 = vsel %vm440, %v2068, 0
    %2085 = vmatprep.subr.mxu0 0.0
    %2086 = vmatpush1.msra.mxu0 %v2069
    %2087 = vmatprep.subr.mxu0 0.0
    %2088 = vmatpush1.msra.mxu0 %v2070
    %2089 = vmatprep.subr.mxu0 0.0
    %2090 = vmatpush1.msra.mxu0 %v2071
    %2091 = vmatprep.subr.mxu0 0.0
    %2092 = vmatpush1.msra.mxu0 %v2072
    %2093 = vmatprep.subr.mxu0 0.0
    %2094 = vmatpush1.msra.mxu0 %v2073
    %2095 = vmatprep.subr.mxu0 0.0
    %2096 = vmatpush1.msra.mxu0 %v2074
    %2097 = vmatprep.subr.mxu0 0.0
    %2098 = vmatpush1.msra.mxu0 %v2075
    %2099 = vmatprep.subr.mxu0 0.0
    %2100 = vmatpush1.msra.mxu0 %v2076
    %2101 = vmatprep.subr.mxu0 0.0
    %2102 = vmatpush1.msra.mxu0 0.0
    %2103 = vmatprep.subr.mxu0 0.0
    %2104 = vmatpush1.msra.mxu0 0.0
    %2105 = vmatprep.subr.mxu0 0.0
    %2106 = vmatpush1.msra.mxu0 0.0
    %2107 = vmatprep.subr.mxu0 0.0
    %2108 = vmatpush1.msra.mxu0 0.0
    %2109 = vmatprep.subr.mxu0 0.0
    %2110 = vmatpush1.msra.mxu0 0.0
    %2111 = vmatprep.subr.mxu0 0.0
    %2112 = vmatpush1.msra.mxu0 0.0
    %2113 = vmatprep.subr.mxu0 0.0
    %2114 = vmatpush1.msra.mxu0 0.0
    %2115 = vmatprep.subr.mxu0 0.0
    %2116 = vmatpush1.msra.mxu0 0.0
    %2117 = vmatprep.subr.mxu0 0.0
    %2118 = vmatpush1.msra.mxu0 0.0
    %2119 = vmatprep.subr.mxu0 0.0
    %2120 = vmatpush1.msra.mxu0 0.0
    %2121 = vmatprep.subr.mxu0 0.0
    %2122 = vmatpush1.msra.mxu0 0.0
    %2123 = vmatprep.subr.mxu0 0.0
    %2124 = vmatpush1.msra.mxu0 0.0
    %2125 = vmatprep.subr.mxu0 0.0
    %2126 = vmatpush1.msra.mxu0 0.0
    %2127 = vmatprep.subr.mxu0 0.0
    %2128 = vmatpush1.msra.mxu0 0.0
    %2129 = vmatprep.subr.mxu0 0.0
    %2130 = vmatpush1.msra.mxu0 0.0
    %2131 = vmatprep.subr.mxu0 0.0
    %2132 = vmatpush1.msra.mxu0 0.0
    %2133 = vmatprep.subr.mxu0 0.0
    %2134 = vmatpush1.msra.mxu0 0.0
    %2135 = vmatprep.subr.mxu0 0.0
    %2136 = vmatpush1.msra.mxu0 0.0
    %2137 = vmatprep.subr.mxu0 0.0
    %2138 = vmatpush1.msra.mxu0 0.0
    %2139 = vmatprep.subr.mxu0 0.0
    %2140 = vmatpush1.msra.mxu0 0.0
    %2141 = vmatprep.subr.mxu0 0.0
    %2142 = vmatpush1.msra.mxu0 0.0
    %2143 = vmatprep.subr.mxu0 0.0
    %2144 = vmatpush1.msra.mxu0 0.0
    %2145 = vmatprep.subr.mxu0 0.0
    %2146 = vmatpush1.msra.mxu0 0.0
    %2147 = vmatprep.subr.mxu0 0.0
    %2148 = vmatpush1.msra.mxu0 0.0
    %2149 = vmatprep.mubr.f32.mxu0 0.0
    %2150 = vmatmul.mubr.f32.gmra.mrb[0].mxu0 %v2083
    %v2151 = vpop.f32.mrb[0].mxu0
    %v2152 = vadd.f32 %v2081, %v2151
    %v2153 = vpop.f32.mrb[0].mxu0
    %2154 = vdwg.mxu0
    %vm2155 = vcmask 58368
    %2156 = vst.msk [vmem:[%s2] sm:$0x3] %vm2155, %v2152
    // Predicated region
    $region18: #{forward.1} parent=1 // pred_check
      _
    $region19: #{forward.1} parent=1 // pred_check_branch
      %2158 = sbr.rel (0) target = $region21
    $region20: #{forward.1} parent=1 // pred_region
      _
    $region21: #{forward.1} parent=1 // pred_fallthru
      _
    // Predicated region
    $region22: #{forward.1} parent=1 // pred_check
      _
    $region23: #{forward.1} parent=1 // pred_check_branch
      %2160 = sbr.rel (0) target = $region25
    $region24: #{forward.1} parent=1 // pred_region
      _
    $region25: #{forward.1} parent=1 // pred_fallthru
      _
    %2161 = vsyncpa [#allocation3], 1
    %2162 = vsyncpa [#allocation5], 1

</llo_original>
